<compile_context>
chip_gen: v5e
topology: v5e:2x2
jax: 0.10.0
libtpu: 0.0.40
codegen_flags: <defaults>
</compile_context>

<pallas_src>
import jax
import jax.numpy as jnp
from jax.experimental import pallas as pl
from jax.experimental.pallas import tpu as pltpu

# ------------------------- model hyper-parameters ---------------------------
B = 2           # batch
N = 8           # sequence length (includes the '0' prefix position)
CIN = 4         # one-hot channels
COUT = 96       # num_filters=(96,)
K = 5           # filter_size=(5,)
CH = COUT // 2  # x_l / x_r split channels (48)
H = 32          # num_hidden_units=(32,)
NOUT_P = 1      # n_out_paired_layers   (kernel assumes 1)
NOUT_U = 1      # n_out_unpaired_layers (kernel assumes 1)
EPS = 1e-5

# packed small-vector rows (each (1, H)), stored at wpk rows R_VEC + idx
_WFM, _PB1, _PLNG, _PLNB, _PW2, _UB1, _ULNG, _ULNB, _UW2, _B2 = range(10)

# wpk row layout
R_CONVW = 0                 # rows [0, K*CIN): im2col conv weight (20, 96)
R_CONVB = K * CIN           # 20: conv bias
R_GNG = K * CIN + 1         # 21: GroupNorm gamma
R_GNB = K * CIN + 2         # 22: GroupNorm beta
R_VEC = K * CIN + 3         # 23: start of the 10 packed (1, H) vectors
WPK_ROWS = R_VEC + 10       # 33


def _celu(x):
    # CELU(alpha=1): exp only evaluated on the clamped-negative branch
    return jnp.where(x > 0, x, jnp.exp(jnp.minimum(x, 0.0)) - 1.0)


def _dot_t(a, b):
    # a (m, k) . b(n, k)^T  ->  (m, n)   (trans_b MXU matmul)
    return jax.lax.dot_general(a, b, (((1,), (1,)), ((), ())),
                               preferred_element_type=jnp.float32)


# ====================== fused batch-in-one-step kernel ======================
def _fused_kernel(xcol_ref, fm_ref, wpk_ref, wbig_ref, out_ref):
    npair = B * N * N        # 128 pair rows
    nun = B * N              # 16 unpaired rows

    def vrow(r):             # one packed (1, H) small-parameter row
        return wpk_ref[R_VEC + r:R_VEC + r + 1, 0:H]

    # ---------------- encoder: Conv1d (im2col) + GroupNorm(1,C) + CELU ------
    y = jnp.dot(xcol_ref[...], wpk_ref[R_CONVW:R_CONVB, :],
                preferred_element_type=jnp.float32)            # (B*N, COUT)
    y = y + wpk_ref[R_CONVB:R_CONVB + 1, :]
    # per-sample GroupNorm(num_groups=1): two-pass stats over each (N, COUT) block
    parts = []
    for b in range(B):
        yb = y[b * N:(b + 1) * N, :]
        mu = jnp.mean(yb)
        d = yb - mu
        var = jnp.mean(d * d)
        parts.append(d * jax.lax.rsqrt(var + EPS))
    yn = jnp.concatenate(parts, axis=0)                         # (B*N, COUT)
    yn = yn * wpk_ref[R_GNG:R_GNG + 1, :] + wpk_ref[R_GNB:R_GNB + 1, :]
    xe = _celu(yn)                                              # (B*N, COUT)

    # ---- paired + unpaired first linears as ONE (B*N,96)x(96,96) MXU dot ---
    acu = jnp.dot(xe, wbig_ref[...], preferred_element_type=jnp.float32)
    a = acu[:, 0:H]             # paired per-row (i) term  (x_l @ Wl, split folded)
    c = acu[:, H:2 * H]         # paired per-col (j) term  (x_r @ Wr, reverse folded)
    hu = acu[:, 2 * H:3 * H]    # unpaired first linear
    hu = hu + vrow(_UB1)

    # ---- paired pair plane, flat (B*N*N, H), triu(k=1) mask ----------------
    row2 = jax.lax.broadcasted_iota(jnp.int32, (N, N), 0)
    col2 = jax.lax.broadcasted_iota(jnp.int32, (N, N), 1)
    mask3 = (col2 > row2).astype(jnp.float32)[:, :, None]       # (N, N, 1)
    pair_parts = []
    for b in range(B):
        ab = a[b * N:(b + 1) * N, :]
        cb = c[b * N:(b + 1) * N, :]
        pb = mask3 * (ab[:, None, :] + cb[None, :, :])          # (N, N, H)
        pair_parts.append(pb.reshape(N * N, H))
    hp = jnp.concatenate(pair_parts, axis=0)                    # (B*N*N, H)
    hp = hp + fm_ref[...] * vrow(_WFM) + vrow(_PB1)             # fm (128,1)*(1,H)

    # ---- stacked LayerNorm + CELU over paired & unpaired rows --------------
    hall = jnp.concatenate([hp, hu], axis=0)                    # (144, H)
    mu = jnp.mean(hall, axis=-1, keepdims=True)
    d = hall - mu
    var = jnp.mean(d * d, axis=-1, keepdims=True)
    xn = d * jax.lax.rsqrt(var + EPS)
    is_p = jax.lax.broadcasted_iota(jnp.int32, (npair + nun, 1), 0) < npair
    gam = jnp.where(is_p, vrow(_PLNG), vrow(_ULNG))
    bet = jnp.where(is_p, vrow(_PLNB), vrow(_ULNB))
    hact = _celu(xn * gam + bet)                                # (144, H)

    # ---- heads on the MXU: (1,H) . rows^T -> lane-dense 128-wide rows ------
    sp = _dot_t(vrow(_PW2), hact[0:npair, :]) \
        + wpk_ref[R_VEC + _B2:R_VEC + _B2 + 1, 0:1]             # (1, 128)
    hu_pad = jnp.concatenate(
        [hact[npair:, :], jnp.zeros((npair - nun, H), jnp.float32)], axis=0)
    su = _dot_t(vrow(_UW2), hu_pad) \
        + wpk_ref[R_VEC + _B2:R_VEC + _B2 + 1, 1:2]             # (1, 128)
    out_ref[0:1, :] = sp
    out_ref[1:2, :] = su


# =========================== one-time weight prep ============================
def pack_params(p):
    """Fold channel split/reverse into weights; consolidate into two arrays."""
    wim = p["conv_w"].reshape(K * CIN, COUT)                      # im2col layout
    # final-layer scalar biases packed into one (1, H) row (lane0=paired, lane1=unpaired)
    b2 = jnp.zeros((1, H), jnp.float32)
    b2 = b2.at[0, 0].set(p["p_b2"][0, 0]).at[0, 1].set(p["u_b2"][0, 0])
    vec = jnp.concatenate(
        [p["p_wfm"], p["p_b1"], p["p_lng"], p["p_lnb"], p["p_w2"].T,
         p["u_b1"], p["u_lng"], p["u_lnb"], p["u_w2"].T, b2], axis=0)  # (10, H)
    vec96 = jnp.pad(vec, ((0, 0), (0, COUT - H)))                      # (10, COUT)
    wpk = jnp.concatenate([wim, p["conv_b"], p["gn_g"], p["gn_b"], vec96],
                          axis=0)                                      # (33, 96)
    # first linears: paired Wl scattered to even rows (cols :H), reversed Wr to
    # odd rows (cols H:2H) so that xe @ wbig == [x_l@Wl | x_r@Wr | xe@W1_unpaired]
    wbig = jnp.zeros((COUT, 3 * H), jnp.float32)
    wbig = wbig.at[0::2, 0:H].set(p["p_wl"])
    wbig = wbig.at[1::2, H:2 * H].set(p["p_wr"][::-1])
    wbig = wbig.at[:, 2 * H:].set(p["u_w1"])                           # (96, 96)
    return {"wpk": wpk, "wbig": wbig}


# ============================ full forward (glue) ============================
def one_hot_embedding(tokens):
    # OneHotEmbedding: tokens 1..4 -> one-hot over ACGU, token 0 ('0' pad) -> zeros
    x = jax.nn.one_hot(tokens - 1, CIN, dtype=jnp.float32)
    return x * (tokens > 0)[..., None].astype(jnp.float32)


def neural_net_forward(tokens, fm_embedding, packed):
    b, n = tokens.shape
    pad = K // 2
    x = one_hot_embedding(tokens)                                   # (B, N, CIN)
    xp = jnp.pad(x, ((0, 0), (pad, pad), (0, 0)))                   # (B, N+4, CIN)
    # im2col slab built by XLA in the wrapper (layout plumbing, not compute):
    # avoids in-kernel sublane-offset slice/concat relayouts.
    xcol = jnp.concatenate([xp[:, k:k + n, :] for k in range(K)],
                           axis=-1).reshape(b * n, K * CIN)         # (B*N, 20)
    fm_col = fm_embedding.reshape(b * n * n, 1)                     # (B*N*N, 1)

    out = pl.pallas_call(
        _fused_kernel,
        out_shape=jax.ShapeDtypeStruct((2, b * n * n), jnp.float32),
        grid=(1,),
        in_specs=[
            pl.BlockSpec((b * n, K * CIN), lambda i: (0, 0)),       # im2col input
            pl.BlockSpec((b * n * n, 1), lambda i: (0, 0)),         # fm column
            pl.BlockSpec((WPK_ROWS, COUT), lambda i: (0, 0)),       # conv/GN/vectors
            pl.BlockSpec((COUT, 3 * H), lambda i: (0, 0)),          # first linears
        ],
        out_specs=pl.BlockSpec((2, b * n * n), lambda i: (0, 0)),
        compiler_params=pltpu.CompilerParams(
            dimension_semantics=("arbitrary",)),
    )(xcol, fm_col, packed["wpk"], packed["wbig"])

    score_paired = out[0].reshape(b, n, n, NOUT_P)                  # (B, N, N, 1)
    score_unpaired = out[1, :b * n].reshape(b, n, NOUT_U)           # (B, N, 1)
    return score_paired, score_unpaired
    # TODO(synk): nn.Dropout layers are identity in eval mode (rate=0 here).


# ============================= parameter init ================================
def init_params(key):
    ks = jax.random.split(key, 18)
    s = 0.1
    p = {}
    # encoder (conv weight stored tap-major: (K, Cin, Cout))
    p["conv_w"] = s * jax.random.normal(ks[0], (K, CIN, COUT), jnp.float32)
    p["conv_b"] = s * jax.random.normal(ks[1], (1, COUT), jnp.float32)
    p["gn_g"] = 1.0 + s * jax.random.normal(ks[2], (1, COUT), jnp.float32)
    p["gn_b"] = s * jax.random.normal(ks[3], (1, COUT), jnp.float32)
    # PairedLayer fc: Linear(97,32) split into [Wl | Wr | wfm], LN(32), Linear(32,1)
    p["p_wl"] = s * jax.random.normal(ks[4], (CH, H), jnp.float32)
    p["p_wr"] = s * jax.random.normal(ks[5], (CH, H), jnp.float32)
    p["p_wfm"] = s * jax.random.normal(ks[6], (1, H), jnp.float32)
    p["p_b1"] = s * jax.random.normal(ks[7], (1, H), jnp.float32)
    p["p_lng"] = 1.0 + s * jax.random.normal(ks[8], (1, H), jnp.float32)
    p["p_lnb"] = s * jax.random.normal(ks[9], (1, H), jnp.float32)
    p["p_w2"] = s * jax.random.normal(ks[10], (H, NOUT_P), jnp.float32)
    p["p_b2"] = s * jax.random.normal(ks[11], (1, NOUT_P), jnp.float32)
    # UnpairedLayer fc: Linear(96,32), LN(32), Linear(32,1)
    p["u_w1"] = s * jax.random.normal(ks[12], (COUT, H), jnp.float32)
    p["u_b1"] = s * jax.random.normal(ks[13], (1, H), jnp.float32)
    p["u_lng"] = 1.0 + s * jax.random.normal(ks[14], (1, H), jnp.float32)
    p["u_lnb"] = s * jax.random.normal(ks[15], (1, H), jnp.float32)
    p["u_w2"] = s * jax.random.normal(ks[16], (H, NOUT_U), jnp.float32)
    p["u_b2"] = s * jax.random.normal(ks[17], (1, NOUT_U), jnp.float32)
    return p


# ====================== pure-JAX reference (for checking) ====================
def reference_forward(tokens, fm, p):
    hi = jax.lax.Precision.HIGHEST
    x = one_hot_embedding(tokens)
    pad = K // 2
    xp = jnp.pad(x, ((0, 0), (pad, pad), (0, 0)))
    y = sum(jnp.einsum("bnc,co->bno", xp[:, k:k + N, :], p["conv_w"][k], precision=hi)
            for k in range(K)) + p["conv_b"][None]
    mu = jnp.mean(y, axis=(1, 2), keepdims=True)
    var = jnp.mean((y - mu) ** 2, axis=(1, 2), keepdims=True)
    y = (y - mu) / jnp.sqrt(var + EPS) * p["gn_g"][None] + p["gn_b"][None]
    x_enc = _celu(y)
    x_l = x_enc[:, :, 0::2]
    x_r = x_enc[:, :, 1::2][:, :, ::-1]
    # Transform2D cat + PairedLayer (PyTorch-mirroring form)
    xl2 = jnp.broadcast_to(x_l[:, :, None, :], (B, N, N, CH))
    xr2 = jnp.broadcast_to(x_r[:, None, :, :], (B, N, N, CH))
    xlr = jnp.concatenate([xl2, xr2], axis=-1)                        # (B,N,N,96)
    mask = jnp.triu(jnp.ones((N, N), jnp.float32), k=1)
    xlr = xlr * mask[None, :, :, None]
    feat = jnp.concatenate([xlr, fm[..., None]], axis=-1)             # (B,N,N,97)
    w1 = jnp.concatenate([p["p_wl"], p["p_wr"], p["p_wfm"]], axis=0)  # (97,32)
    h = jnp.einsum("bijc,ch->bijh", feat, w1, precision=hi) + p["p_b1"][None, None]
    mu = jnp.mean(h, axis=-1, keepdims=True)
    var = jnp.mean((h - mu) ** 2, axis=-1, keepdims=True)
    h = (h - mu) / jnp.sqrt(var + EPS) * p["p_lng"][None, None] + p["p_lnb"][None, None]
    h = _celu(h)
    sp = jnp.einsum("bijh,ho->bijo", h, p["p_w2"], precision=hi) + p["p_b2"][None, None]
    # UnpairedLayer
    h = jnp.einsum("bnc,ch->bnh", x_enc, p["u_w1"], precision=hi) + p["u_b1"][None]
    mu = jnp.mean(h, axis=-1, keepdims=True)
    var = jnp.mean((h - mu) ** 2, axis=-1, keepdims=True)
    h = (h - mu) / jnp.sqrt(var + EPS) * p["u_lng"][None] + p["u_lnb"][None]
    h = _celu(h)
    su = jnp.einsum("bnh,ho->bno", h, p["u_w2"], precision=hi) + p["u_b2"][None]
    return sp, su


# =================================== main ====================================
if __name__ == "__main__":
    key = jax.random.PRNGKey(0)
    k_tok, k_fm, k_par = jax.random.split(key, 3)

    # seq: integer tokens 1..4 (A,C,G,U), with the '0' prefix pad at position 0
    tokens = jax.random.randint(k_tok, (B, N), 1, 5)
    tokens = tokens.at[:, 0].set(0)
    fm_embedding = jax.random.normal(k_fm, (B, N, N), jnp.float32)
    params = init_params(k_par)
    packed = pack_params(params)          # one-time weight preprocessing

    fwd = jax.jit(neural_net_forward)
    sp, su = fwd(tokens, fm_embedding, packed)
    sp = jax.block_until_ready(sp)
    su = jax.block_until_ready(su)

    sp_ref, su_ref = reference_forward(tokens, fm_embedding, params)
    assert sp.shape == (B, N, N, NOUT_P) and su.shape == (B, N, NOUT_U)
    assert jnp.allclose(sp, sp_ref, atol=1e-3, rtol=1e-3)
    assert jnp.allclose(su, su_ref, atol=1e-3, rtol=1e-3)

    print("KERNEL_OK")
</pallas_src>

<mosaic_0001>
module attributes {stable_mosaic.version = 11 : i64} {
  func.func @_fused_kernel(%arg0: i32, %arg1: memref<16x20xf32, #tpu.memory_space<vmem>>, %arg2: memref<128x1xf32, #tpu.memory_space<vmem>>, %arg3: memref<33x96xf32, #tpu.memory_space<vmem>>, %arg4: memref<96x96xf32, #tpu.memory_space<vmem>>, %arg5: memref<2x128xf32, #tpu.memory_space<vmem>>) attributes {dimension_semantics = [#tpu.dimension_semantics<arbitrary>], iteration_bounds = array<i64: 1>, scalar_prefetch = 0 : i64, scratch_operands = 0 : i64, tpu.core_type = #tpu.core_type<tc>, window_params = [{pipeline_mode = #tpu.pipeline_mode<synchronous>, transform_indices = @transform_0, window_bounds = array<i64: 16, 20>}, {pipeline_mode = #tpu.pipeline_mode<synchronous>, transform_indices = @transform_1, window_bounds = array<i64: 128, 1>}, {pipeline_mode = #tpu.pipeline_mode<synchronous>, transform_indices = @transform_2, window_bounds = array<i64: 33, 96>}, {pipeline_mode = #tpu.pipeline_mode<synchronous>, transform_indices = @transform_3, window_bounds = array<i64: 96, 96>}, {pipeline_mode = #tpu.pipeline_mode<synchronous>, transform_indices = @transform_4, window_bounds = array<i64: 2, 128>}]} {
    %c0 = arith.constant 0 : index
    %c0_0 = arith.constant 0 : index
    %0 = vector.load %arg1[%c0, %c0_0] : memref<16x20xf32, #tpu.memory_space<vmem>>, vector<16x20xf32>
    %c0_1 = arith.constant 0 : index
    %c0_2 = arith.constant 0 : index
    %1 = vector.load %arg3[%c0_1, %c0_2] : memref<33x96xf32, #tpu.memory_space<vmem>>, vector<20x96xf32>
    %cst = arith.constant dense<0.000000e+00> : vector<16x96xf32>
    %2 = tpu.matmul %0, %1, %cst {dimension_numbers = #tpu.dot_dimension_numbers<[1], [0], [0], [1], [0, 0, 1, 1], [], []>} : vector<16x20xf32>, vector<20x96xf32>, vector<16x96xf32> -> vector<16x96xf32>
    %c20 = arith.constant 20 : index
    %c0_3 = arith.constant 0 : index
    %3 = vector.load %arg3[%c20, %c0_3] : memref<33x96xf32, #tpu.memory_space<vmem>>, vector<1x96xf32>
    %4 = vector.broadcast %3 : vector<1x96xf32> to vector<16x96xf32>
    %5 = arith.addf %2, %4 : vector<16x96xf32>
    %6 = vector.extract_strided_slice %5 {offsets = [0, 0], sizes = [8, 96], strides = [1, 1]} : vector<16x96xf32> to vector<8x96xf32>
    %7 = vector.shape_cast %6 : vector<8x96xf32> to vector<1x8x96xf32>
    %cst_4 = arith.constant dense<0.000000e+00> : vector<1xf32>
    %8 = vector.multi_reduction <add>, %7, %cst_4 [1, 2] : vector<1x8x96xf32> to vector<1xf32>
    %9 = vector.shape_cast %8 : vector<1xf32> to vector<1x1x1xf32>
    %10 = vector.extract %9[0, 0, 0] : f32 from vector<1x1x1xf32>
    %cst_5 = arith.constant 7.680000e+02 : f32
    %11 = arith.divf %10, %cst_5 : f32
    %12 = vector.broadcast %11 : f32 to vector<8x96xf32>
    %13 = arith.subf %6, %12 : vector<8x96xf32>
    %14 = arith.mulf %13, %13 : vector<8x96xf32>
    %15 = vector.shape_cast %14 : vector<8x96xf32> to vector<1x8x96xf32>
    %cst_6 = arith.constant dense<0.000000e+00> : vector<1xf32>
    %16 = vector.multi_reduction <add>, %15, %cst_6 [1, 2] : vector<1x8x96xf32> to vector<1xf32>
    %17 = vector.shape_cast %16 : vector<1xf32> to vector<1x1x1xf32>
    %18 = vector.extract %17[0, 0, 0] : f32 from vector<1x1x1xf32>
    %cst_7 = arith.constant 7.680000e+02 : f32
    %19 = arith.divf %18, %cst_7 : f32
    %cst_8 = arith.constant 9.99999974E-6 : f32
    %20 = arith.addf %19, %cst_8 : f32
    %21 = math.rsqrt %20 : f32
    %22 = vector.broadcast %21 : f32 to vector<8x96xf32>
    %23 = arith.mulf %13, %22 : vector<8x96xf32>
    %24 = vector.extract_strided_slice %5 {offsets = [8, 0], sizes = [8, 96], strides = [1, 1]} : vector<16x96xf32> to vector<8x96xf32>
    %25 = vector.shape_cast %24 : vector<8x96xf32> to vector<1x8x96xf32>
    %cst_9 = arith.constant dense<0.000000e+00> : vector<1xf32>
    %26 = vector.multi_reduction <add>, %25, %cst_9 [1, 2] : vector<1x8x96xf32> to vector<1xf32>
    %27 = vector.shape_cast %26 : vector<1xf32> to vector<1x1x1xf32>
    %28 = vector.extract %27[0, 0, 0] : f32 from vector<1x1x1xf32>
    %cst_10 = arith.constant 7.680000e+02 : f32
    %29 = arith.divf %28, %cst_10 : f32
    %30 = vector.broadcast %29 : f32 to vector<8x96xf32>
    %31 = arith.subf %24, %30 : vector<8x96xf32>
    %32 = arith.mulf %31, %31 : vector<8x96xf32>
    %33 = vector.shape_cast %32 : vector<8x96xf32> to vector<1x8x96xf32>
    %cst_11 = arith.constant dense<0.000000e+00> : vector<1xf32>
    %34 = vector.multi_reduction <add>, %33, %cst_11 [1, 2] : vector<1x8x96xf32> to vector<1xf32>
    %35 = vector.shape_cast %34 : vector<1xf32> to vector<1x1x1xf32>
    %36 = vector.extract %35[0, 0, 0] : f32 from vector<1x1x1xf32>
    %cst_12 = arith.constant 7.680000e+02 : f32
    %37 = arith.divf %36, %cst_12 : f32
    %cst_13 = arith.constant 9.99999974E-6 : f32
    %38 = arith.addf %37, %cst_13 : f32
    %39 = math.rsqrt %38 : f32
    %40 = vector.broadcast %39 : f32 to vector<8x96xf32>
    %41 = arith.mulf %31, %40 : vector<8x96xf32>
    %42 = tpu.concatenate %23, %41 in 0 : vector<8x96xf32>, vector<8x96xf32> -> vector<16x96xf32>
    %c21 = arith.constant 21 : index
    %c0_14 = arith.constant 0 : index
    %43 = vector.load %arg3[%c21, %c0_14] : memref<33x96xf32, #tpu.memory_space<vmem>>, vector<1x96xf32>
    %44 = vector.broadcast %43 : vector<1x96xf32> to vector<16x96xf32>
    %45 = arith.mulf %42, %44 : vector<16x96xf32>
    %c22 = arith.constant 22 : index
    %c0_15 = arith.constant 0 : index
    %46 = vector.load %arg3[%c22, %c0_15] : memref<33x96xf32, #tpu.memory_space<vmem>>, vector<1x96xf32>
    %47 = vector.broadcast %46 : vector<1x96xf32> to vector<16x96xf32>
    %48 = arith.addf %45, %47 : vector<16x96xf32>
    %cst_16 = arith.constant 0.000000e+00 : f32
    %49 = vector.broadcast %cst_16 : f32 to vector<16x96xf32>
    %50 = arith.cmpf ogt, %48, %49 : vector<16x96xf32>
    %cst_17 = arith.constant 0.000000e+00 : f32
    %51 = vector.broadcast %cst_17 : f32 to vector<16x96xf32>
    %52 = arith.minimumf %48, %51 : vector<16x96xf32>
    %53 = math.exp %52 : vector<16x96xf32>
    %cst_18 = arith.constant 1.000000e+00 : f32
    %54 = vector.broadcast %cst_18 : f32 to vector<16x96xf32>
    %55 = arith.subf %53, %54 : vector<16x96xf32>
    %56 = arith.select %50, %48, %55 : vector<16x96xi1>, vector<16x96xf32>
    %c0_19 = arith.constant 0 : index
    %c0_20 = arith.constant 0 : index
    %57 = vector.load %arg4[%c0_19, %c0_20] : memref<96x96xf32, #tpu.memory_space<vmem>>, vector<96x96xf32>
    %cst_21 = arith.constant dense<0.000000e+00> : vector<16x96xf32>
    %58 = tpu.matmul %56, %57, %cst_21 {dimension_numbers = #tpu.dot_dimension_numbers<[1], [0], [0], [1], [0, 0, 1, 1], [], []>} : vector<16x96xf32>, vector<96x96xf32>, vector<16x96xf32> -> vector<16x96xf32>
    %59 = vector.extract_strided_slice %58 {offsets = [0, 0], sizes = [16, 32], strides = [1, 1]} : vector<16x96xf32> to vector<16x32xf32>
    %60 = vector.extract_strided_slice %58 {offsets = [0, 32], sizes = [16, 32], strides = [1, 1]} : vector<16x96xf32> to vector<16x32xf32>
    %61 = vector.extract_strided_slice %58 {offsets = [0, 64], sizes = [16, 32], strides = [1, 1]} : vector<16x96xf32> to vector<16x32xf32>
    %c28 = arith.constant 28 : index
    %c0_22 = arith.constant 0 : index
    %62 = vector.load %arg3[%c28, %c0_22] : memref<33x96xf32, #tpu.memory_space<vmem>>, vector<1x32xf32>
    %63 = vector.broadcast %62 : vector<1x32xf32> to vector<16x32xf32>
    %64 = arith.addf %61, %63 : vector<16x32xf32>
    %65 = tpu.iota {dimensions = array<i32: 0>} : vector<8x8xi32>
    %66 = tpu.iota {dimensions = array<i32: 1>} : vector<8x8xi32>
    %67 = arith.cmpi sgt, %66, %65 : vector<8x8xi32>
    %68 = arith.extui %67 : vector<8x8xi1> to vector<8x8xi32>
    %69 = arith.sitofp %68 : vector<8x8xi32> to vector<8x8xf32>
    %70 = vector.shape_cast %69 : vector<8x8xf32> to vector<8x8x1xf32>
    %71 = vector.extract_strided_slice %59 {offsets = [0, 0], sizes = [8, 32], strides = [1, 1]} : vector<16x32xf32> to vector<8x32xf32>
    %72 = vector.extract_strided_slice %60 {offsets = [0, 0], sizes = [8, 32], strides = [1, 1]} : vector<16x32xf32> to vector<8x32xf32>
    %73 = vector.shape_cast %71 : vector<8x32xf32> to vector<8x1x32xf32>
    %74 = vector.shape_cast %72 : vector<8x32xf32> to vector<1x8x32xf32>
    %75 = vector.broadcast %73 : vector<8x1x32xf32> to vector<8x8x32xf32>
    %76 = vector.broadcast %74 : vector<1x8x32xf32> to vector<8x8x32xf32>
    %77 = arith.addf %75, %76 : vector<8x8x32xf32>
    %78 = vector.broadcast %70 : vector<8x8x1xf32> to vector<8x8x32xf32>
    %79 = arith.mulf %78, %77 : vector<8x8x32xf32>
    %80 = vector.shape_cast %79 : vector<8x8x32xf32> to vector<64x32xf32>
    %81 = vector.extract_strided_slice %59 {offsets = [8, 0], sizes = [8, 32], strides = [1, 1]} : vector<16x32xf32> to vector<8x32xf32>
    %82 = vector.extract_strided_slice %60 {offsets = [8, 0], sizes = [8, 32], strides = [1, 1]} : vector<16x32xf32> to vector<8x32xf32>
    %83 = vector.shape_cast %81 : vector<8x32xf32> to vector<8x1x32xf32>
    %84 = vector.shape_cast %82 : vector<8x32xf32> to vector<1x8x32xf32>
    %85 = vector.broadcast %83 : vector<8x1x32xf32> to vector<8x8x32xf32>
    %86 = vector.broadcast %84 : vector<1x8x32xf32> to vector<8x8x32xf32>
    %87 = arith.addf %85, %86 : vector<8x8x32xf32>
    %88 = vector.broadcast %70 : vector<8x8x1xf32> to vector<8x8x32xf32>
    %89 = arith.mulf %88, %87 : vector<8x8x32xf32>
    %90 = vector.shape_cast %89 : vector<8x8x32xf32> to vector<64x32xf32>
    %91 = tpu.concatenate %80, %90 in 0 : vector<64x32xf32>, vector<64x32xf32> -> vector<128x32xf32>
    %c0_23 = arith.constant 0 : index
    %c0_24 = arith.constant 0 : index
    %92 = vector.load %arg2[%c0_23, %c0_24] : memref<128x1xf32, #tpu.memory_space<vmem>>, vector<128x1xf32>
    %c23 = arith.constant 23 : index
    %c0_25 = arith.constant 0 : index
    %93 = vector.load %arg3[%c23, %c0_25] : memref<33x96xf32, #tpu.memory_space<vmem>>, vector<1x32xf32>
    %94 = vector.broadcast %92 : vector<128x1xf32> to vector<128x32xf32>
    %95 = vector.broadcast %93 : vector<1x32xf32> to vector<128x32xf32>
    %96 = arith.mulf %94, %95 : vector<128x32xf32>
    %97 = arith.addf %91, %96 : vector<128x32xf32>
    %c24 = arith.constant 24 : index
    %c0_26 = arith.constant 0 : index
    %98 = vector.load %arg3[%c24, %c0_26] : memref<33x96xf32, #tpu.memory_space<vmem>>, vector<1x32xf32>
    %99 = vector.broadcast %98 : vector<1x32xf32> to vector<128x32xf32>
    %100 = arith.addf %97, %99 : vector<128x32xf32>
    %101 = tpu.concatenate %100, %64 in 0 : vector<128x32xf32>, vector<16x32xf32> -> vector<144x32xf32>
    %cst_27 = arith.constant dense<0.000000e+00> : vector<144xf32>
    %102 = vector.multi_reduction <add>, %101, %cst_27 [1] : vector<144x32xf32> to vector<144xf32>
    %103 = vector.shape_cast %102 : vector<144xf32> to vector<144x1xf32>
    %cst_28 = arith.constant 3.200000e+01 : f32
    %104 = vector.broadcast %cst_28 : f32 to vector<144x1xf32>
    %105 = arith.divf %103, %104 : vector<144x1xf32>
    %106 = vector.broadcast %105 : vector<144x1xf32> to vector<144x32xf32>
    %107 = arith.subf %101, %106 : vector<144x32xf32>
    %108 = arith.mulf %107, %107 : vector<144x32xf32>
    %cst_29 = arith.constant dense<0.000000e+00> : vector<144xf32>
    %109 = vector.multi_reduction <add>, %108, %cst_29 [1] : vector<144x32xf32> to vector<144xf32>
    %110 = vector.shape_cast %109 : vector<144xf32> to vector<144x1xf32>
    %cst_30 = arith.constant 3.200000e+01 : f32
    %111 = vector.broadcast %cst_30 : f32 to vector<144x1xf32>
    %112 = arith.divf %110, %111 : vector<144x1xf32>
    %cst_31 = arith.constant 9.99999974E-6 : f32
    %113 = vector.broadcast %cst_31 : f32 to vector<144x1xf32>
    %114 = arith.addf %112, %113 : vector<144x1xf32>
    %115 = math.rsqrt %114 : vector<144x1xf32>
    %116 = vector.broadcast %115 : vector<144x1xf32> to vector<144x32xf32>
    %117 = arith.mulf %107, %116 : vector<144x32xf32>
    %118 = tpu.iota {dimensions = array<i32: 0>} : vector<144x1xi32>
    %c128_i32 = arith.constant 128 : i32
    %119 = vector.broadcast %c128_i32 : i32 to vector<144x1xi32>
    %120 = arith.cmpi slt, %118, %119 : vector<144x1xi32>
    %c25 = arith.constant 25 : index
    %c0_32 = arith.constant 0 : index
    %121 = vector.load %arg3[%c25, %c0_32] : memref<33x96xf32, #tpu.memory_space<vmem>>, vector<1x32xf32>
    %c29 = arith.constant 29 : index
    %c0_33 = arith.constant 0 : index
    %122 = vector.load %arg3[%c29, %c0_33] : memref<33x96xf32, #tpu.memory_space<vmem>>, vector<1x32xf32>
    %123 = vector.shape_cast %120 : vector<144x1xi1> to vector<144x1xi1>
    %124 = vector.broadcast %123 : vector<144x1xi1> to vector<144x32xi1>
    %125 = vector.shape_cast %121 : vector<1x32xf32> to vector<1x32xf32>
    %126 = vector.broadcast %125 : vector<1x32xf32> to vector<144x32xf32>
    %127 = vector.shape_cast %122 : vector<1x32xf32> to vector<1x32xf32>
    %128 = vector.broadcast %127 : vector<1x32xf32> to vector<144x32xf32>
    %129 = arith.select %124, %126, %128 : vector<144x32xi1>, vector<144x32xf32>
    %c26 = arith.constant 26 : index
    %c0_34 = arith.constant 0 : index
    %130 = vector.load %arg3[%c26, %c0_34] : memref<33x96xf32, #tpu.memory_space<vmem>>, vector<1x32xf32>
    %c30 = arith.constant 30 : index
    %c0_35 = arith.constant 0 : index
    %131 = vector.load %arg3[%c30, %c0_35] : memref<33x96xf32, #tpu.memory_space<vmem>>, vector<1x32xf32>
    %132 = vector.shape_cast %120 : vector<144x1xi1> to vector<144x1xi1>
    %133 = vector.broadcast %132 : vector<144x1xi1> to vector<144x32xi1>
    %134 = vector.shape_cast %130 : vector<1x32xf32> to vector<1x32xf32>
    %135 = vector.broadcast %134 : vector<1x32xf32> to vector<144x32xf32>
    %136 = vector.shape_cast %131 : vector<1x32xf32> to vector<1x32xf32>
    %137 = vector.broadcast %136 : vector<1x32xf32> to vector<144x32xf32>
    %138 = arith.select %133, %135, %137 : vector<144x32xi1>, vector<144x32xf32>
    %139 = arith.mulf %117, %129 : vector<144x32xf32>
    %140 = arith.addf %139, %138 : vector<144x32xf32>
    %cst_36 = arith.constant 0.000000e+00 : f32
    %141 = vector.broadcast %cst_36 : f32 to vector<144x32xf32>
    %142 = arith.cmpf ogt, %140, %141 : vector<144x32xf32>
    %cst_37 = arith.constant 0.000000e+00 : f32
    %143 = vector.broadcast %cst_37 : f32 to vector<144x32xf32>
    %144 = arith.minimumf %140, %143 : vector<144x32xf32>
    %145 = math.exp %144 : vector<144x32xf32>
    %cst_38 = arith.constant 1.000000e+00 : f32
    %146 = vector.broadcast %cst_38 : f32 to vector<144x32xf32>
    %147 = arith.subf %145, %146 : vector<144x32xf32>
    %148 = arith.select %142, %140, %147 : vector<144x32xi1>, vector<144x32xf32>
    %c27 = arith.constant 27 : index
    %c0_39 = arith.constant 0 : index
    %149 = vector.load %arg3[%c27, %c0_39] : memref<33x96xf32, #tpu.memory_space<vmem>>, vector<1x32xf32>
    %150 = vector.extract_strided_slice %148 {offsets = [0, 0], sizes = [128, 32], strides = [1, 1]} : vector<144x32xf32> to vector<128x32xf32>
    %cst_40 = arith.constant dense<0.000000e+00> : vector<1x128xf32>
    %151 = tpu.matmul %149, %150, %cst_40 {dimension_numbers = #tpu.dot_dimension_numbers<[1], [1], [0], [0], [0, 0, 1, 0], [], []>} : vector<1x32xf32>, vector<128x32xf32>, vector<1x128xf32> -> vector<1x128xf32>
    %c32 = arith.constant 32 : index
    %c0_41 = arith.constant 0 : index
    %152 = vector.load %arg3[%c32, %c0_41] : memref<33x96xf32, #tpu.memory_space<vmem>>, vector<1x1xf32>
    %153 = vector.broadcast %152 : vector<1x1xf32> to vector<1x128xf32>
    %154 = arith.addf %151, %153 : vector<1x128xf32>
    %155 = vector.extract_strided_slice %148 {offsets = [128, 0], sizes = [16, 32], strides = [1, 1]} : vector<144x32xf32> to vector<16x32xf32>
    %cst_42 = arith.constant 0.000000e+00 : f32
    %156 = vector.broadcast %cst_42 : f32 to vector<112x32xf32>
    %157 = tpu.concatenate %155, %156 in 0 : vector<16x32xf32>, vector<112x32xf32> -> vector<128x32xf32>
    %c31 = arith.constant 31 : index
    %c0_43 = arith.constant 0 : index
    %158 = vector.load %arg3[%c31, %c0_43] : memref<33x96xf32, #tpu.memory_space<vmem>>, vector<1x32xf32>
    %cst_44 = arith.constant dense<0.000000e+00> : vector<1x128xf32>
    %159 = tpu.matmul %158, %157, %cst_44 {dimension_numbers = #tpu.dot_dimension_numbers<[1], [1], [0], [0], [0, 0, 1, 0], [], []>} : vector<1x32xf32>, vector<128x32xf32>, vector<1x128xf32> -> vector<1x128xf32>
    %c32_45 = arith.constant 32 : index
    %c1 = arith.constant 1 : index
    %160 = vector.load %arg3[%c32_45, %c1] : memref<33x96xf32, #tpu.memory_space<vmem>>, vector<1x1xf32>
    %161 = vector.broadcast %160 : vector<1x1xf32> to vector<1x128xf32>
    %162 = arith.addf %159, %161 : vector<1x128xf32>
    %c0_46 = arith.constant 0 : index
    %c0_47 = arith.constant 0 : index
    %163 = vector.load %arg5[%c0_46, %c0_47] : memref<2x128xf32, #tpu.memory_space<vmem>>, vector<1x128xf32>
    tpu.vector_store %arg5[%c0_46, %c0_47], %154 {strides = array<i32>} : memref<2x128xf32, #tpu.memory_space<vmem>>, vector<1x128xf32>,
    %c1_48 = arith.constant 1 : index
    %c0_49 = arith.constant 0 : index
    %164 = vector.load %arg5[%c1_48, %c0_49] : memref<2x128xf32, #tpu.memory_space<vmem>>, vector<1x128xf32>
    tpu.vector_store %arg5[%c1_48, %c0_49], %162 {strides = array<i32>} : memref<2x128xf32, #tpu.memory_space<vmem>>, vector<1x128xf32>,
    return
  }
  func.func @transform_0(%arg0: i32) -> (i32, i32) {
    %c0_i32 = arith.constant 0 : i32
    %c0_i32_0 = arith.constant 0 : i32
    %c0_i32_1 = arith.constant 0 : i32
    return %c0_i32, %c0_i32_0 : i32, i32
  }
  func.func @transform_1(%arg0: i32) -> (i32, i32) {
    %c0_i32 = arith.constant 0 : i32
    %c0_i32_0 = arith.constant 0 : i32
    %c0_i32_1 = arith.constant 0 : i32
    return %c0_i32, %c0_i32_0 : i32, i32
  }
  func.func @transform_2(%arg0: i32) -> (i32, i32) {
    %c0_i32 = arith.constant 0 : i32
    %c0_i32_0 = arith.constant 0 : i32
    %c0_i32_1 = arith.constant 0 : i32
    return %c0_i32, %c0_i32_0 : i32, i32
  }
  func.func @transform_3(%arg0: i32) -> (i32, i32) {
    %c0_i32 = arith.constant 0 : i32
    %c0_i32_0 = arith.constant 0 : i32
    %c0_i32_1 = arith.constant 0 : i32
    return %c0_i32, %c0_i32_0 : i32, i32
  }
  func.func @transform_4(%arg0: i32) -> (i32, i32) {
    %c0_i32 = arith.constant 0 : i32
    %c0_i32_0 = arith.constant 0 : i32
    %c0_i32_1 = arith.constant 0 : i32
    return %c0_i32, %c0_i32_0 : i32, i32
  }
}

</mosaic_0001>

<llo_original>
// kernel: squeeze.3
$region0: #{squeeze.3}
  %s0 = inlined_call_operand.vmem [shape: f32[16], index: 0, kind: input, shape index: {}]
  %s1 = inlined_call_operand.hbm [shape: f32[2,8,1], index: 1, kind: output, shape index: {}]
  $region1: #{squeeze.3} parent=0
    #allocation0 [shape = 'u8[1024]{0}', space=vmem, size = 0x400, scoped, tag = 'operand span for operand 1']
    #allocation1 [shape = 's32[1]{0}', space=sflag, size = 0x4, scoped, tag = 'scoped memory for squeeze.3']
    #allocation2 [shape = 'u8[4096]{0}', space=vmem, size = 0x1000, scoped, tag = 'scoped mem for output reshape']
    #allocation3 [shape = 'u8[4096]{0}', space=vmem, size = 0x1000, scoped, tag = 'scoped mem for input reshape']
    %2 = vsyncpa [#allocation1], 0
    %s4 = ssub.s32 2, 1
    %v5 = vld [vmem:[%s0] sm:%s4]
    %6 = vst [vmem:[#allocation3] sm:%s4] %v5
    %v7 = vld [vmem:[#allocation3] sm:$0x1]
    %vm8 = vcmask 64512
    %9 = vst.msk [vmem:[#allocation2] sm:$0x1] %vm8, %v7
    %v10 = vld [vmem:[#allocation3] sm:$0x1]
    %11 = vrot.lane.b32.xlu0 %v10, 120
    %v12 = vpop.permute.xlu0 %11
    %vm13 = vcmask 64512
    %s14 = scalar_lea.vmem [#allocation2], 1
    %15 = vst.msk [vmem:[%s14] sm:$0x1] %vm13, %v12
    %s17 = ssub.s32 4, 1
    %v18 = vld [vmem:[#allocation2] sm:%s17]
    %s20 = ssub.s32 4, 1
    %21 = vst [vmem:[#allocation0] sm:%s20] %v18
    %23 = vsyncadd [#allocation1], 0
    %s25 = sshll.u32 [#allocation0], 4
    %s26 = int_to_ptr.vmem [resolvable:$true] %s25
    %s27 = sshll.u32 %s1, 4
    %s28 = int_to_ptr.hbm [resolvable:$true] %s27
    %30 = dma.vmem_to_hbm [thread:$0]  %s26, 32, %s28, [#allocation1]
    %32 = dma.done [#allocation1], 32
    %33 = vsyncpa [#allocation1], 1

// kernel: squeeze.2
$region0: #{squeeze.2}
  %s0 = inlined_call_operand.vmem [shape: f32[128], index: 0, kind: input, shape index: {}]
  %s1 = inlined_call_operand.hbm [shape: f32[2,8,8,1], index: 1, kind: output, shape index: {}]
  $region1: #{squeeze.2} parent=0
    #allocation0 [shape = 'u8[8192]{0}', space=vmem, size = 0x2000, scoped, tag = 'operand span for operand 1']
    #allocation1 [shape = 's32[1]{0}', space=sflag, size = 0x4, scoped, tag = 'scoped memory for squeeze.2']
    #allocation2 [shape = 'u8[4096]{0}', space=vmem, size = 0x1000, scoped, tag = 'scoped mem for input reshape']
    %2 = vsyncpa [#allocation1], 0
    %s4 = ssub.s32 2, 1
    %v5 = vld [vmem:[%s0] sm:%s4]
    %6 = vst [vmem:[#allocation2] sm:%s4] %v5
    %v7 = vld [vmem:[#allocation2] sm:$0x1]
    %vm8 = vcmask 64512
    %9 = vst.msk [vmem:[#allocation0] sm:$0x1] %vm8, %v7
    %v10 = vld [vmem:[#allocation2] sm:$0x1]
    %11 = vrot.lane.b32.xlu0 %v10, 120
    %v12 = vpop.permute.xlu0 %11
    %vm13 = vcmask 64512
    %s14 = scalar_lea.vmem [#allocation0], 1
    %15 = vst.msk [vmem:[%s14] sm:$0x1] %vm13, %v12
    %v16 = vld [vmem:[#allocation2] sm:$0x1]
    %17 = vrot.lane.b32.xlu0 %v16, 112
    %v18 = vpop.permute.xlu0 %17
    %vm19 = vcmask 64512
    %s20 = scalar_lea.vmem [#allocation0], 2
    %21 = vst.msk [vmem:[%s20] sm:$0x1] %vm19, %v18
    %v22 = vld [vmem:[#allocation2] sm:$0x1]
    %23 = vrot.lane.b32.xlu0 %v22, 104
    %v24 = vpop.permute.xlu0 %23
    %vm25 = vcmask 64512
    %s26 = scalar_lea.vmem [#allocation0], 3
    %27 = vst.msk [vmem:[%s26] sm:$0x1] %vm25, %v24
    %v28 = vld [vmem:[#allocation2] sm:$0x1]
    %29 = vrot.lane.b32.xlu0 %v28, 96
    %v30 = vpop.permute.xlu0 %29
    %vm31 = vcmask 64512
    %s32 = scalar_lea.vmem [#allocation0], 4
    %33 = vst.msk [vmem:[%s32] sm:$0x1] %vm31, %v30
    %v34 = vld [vmem:[#allocation2] sm:$0x1]
    %35 = vrot.lane.b32.xlu0 %v34, 88
    %v36 = vpop.permute.xlu0 %35
    %vm37 = vcmask 64512
    %s38 = scalar_lea.vmem [#allocation0], 5
    %39 = vst.msk [vmem:[%s38] sm:$0x1] %vm37, %v36
    %v40 = vld [vmem:[#allocation2] sm:$0x1]
    %41 = vrot.lane.b32.xlu0 %v40, 80
    %v42 = vpop.permute.xlu0 %41
    %vm43 = vcmask 64512
    %s44 = scalar_lea.vmem [#allocation0], 6
    %45 = vst.msk [vmem:[%s44] sm:$0x1] %vm43, %v42
    %v46 = vld [vmem:[#allocation2] sm:$0x1]
    %47 = vrot.lane.b32.xlu0 %v46, 72
    %v48 = vpop.permute.xlu0 %47
    %vm49 = vcmask 64512
    %s50 = scalar_lea.vmem [#allocation0], 7
    %51 = vst.msk [vmem:[%s50] sm:$0x1] %vm49, %v48
    %v52 = vld [vmem:[#allocation2] sm:$0x1]
    %53 = vrot.lane.b32.xlu0 %v52, 64
    %v54 = vpop.permute.xlu0 %53
    %vm55 = vcmask 64512
    %s56 = scalar_lea.vmem [#allocation0], 8
    %57 = vst.msk [vmem:[%s56] sm:$0x1] %vm55, %v54
    %v58 = vld [vmem:[#allocation2] sm:$0x1]
    %59 = vrot.lane.b32.xlu0 %v58, 56
    %v60 = vpop.permute.xlu0 %59
    %vm61 = vcmask 64512
    %s62 = scalar_lea.vmem [#allocation0], 9
    %63 = vst.msk [vmem:[%s62] sm:$0x1] %vm61, %v60
    %v64 = vld [vmem:[#allocation2] sm:$0x1]
    %65 = vrot.lane.b32.xlu0 %v64, 48
    %v66 = vpop.permute.xlu0 %65
    %vm67 = vcmask 64512
    %s68 = scalar_lea.vmem [#allocation0], 10
    %69 = vst.msk [vmem:[%s68] sm:$0x1] %vm67, %v66
    %v70 = vld [vmem:[#allocation2] sm:$0x1]
    %71 = vrot.lane.b32.xlu0 %v70, 40
    %v72 = vpop.permute.xlu0 %71
    %vm73 = vcmask 64512
    %s74 = scalar_lea.vmem [#allocation0], 11
    %75 = vst.msk [vmem:[%s74] sm:$0x1] %vm73, %v72
    %v76 = vld [vmem:[#allocation2] sm:$0x1]
    %77 = vrot.lane.b32.xlu0 %v76, 32
    %v78 = vpop.permute.xlu0 %77
    %vm79 = vcmask 64512
    %s80 = scalar_lea.vmem [#allocation0], 12
    %81 = vst.msk [vmem:[%s80] sm:$0x1] %vm79, %v78
    %v82 = vld [vmem:[#allocation2] sm:$0x1]
    %83 = vrot.lane.b32.xlu0 %v82, 24
    %v84 = vpop.permute.xlu0 %83
    %vm85 = vcmask 64512
    %s86 = scalar_lea.vmem [#allocation0], 13
    %87 = vst.msk [vmem:[%s86] sm:$0x1] %vm85, %v84
    %v88 = vld [vmem:[#allocation2] sm:$0x1]
    %89 = vrot.lane.b32.xlu0 %v88, 16
    %v90 = vpop.permute.xlu0 %89
    %vm91 = vcmask 64512
    %s92 = scalar_lea.vmem [#allocation0], 14
    %93 = vst.msk [vmem:[%s92] sm:$0x1] %vm91, %v90
    %v94 = vld [vmem:[#allocation2] sm:$0x1]
    %95 = vrot.lane.b32.xlu0 %v94, 8
    %v96 = vpop.permute.xlu0 %95
    %vm97 = vcmask 64512
    %s98 = scalar_lea.vmem [#allocation0], 15
    %99 = vst.msk [vmem:[%s98] sm:$0x1] %vm97, %v96
    %101 = vsyncadd [#allocation1], 0
    %s103 = sshll.u32 [#allocation0], 4
    %s104 = int_to_ptr.vmem [resolvable:$true] %s103
    %s105 = sshll.u32 %s1, 4
    %s106 = int_to_ptr.hbm [resolvable:$true] %s105
    %108 = dma.vmem_to_hbm [thread:$0]  %s104, 256, %s106, [#allocation1]
    %110 = dma.done [#allocation1], 256
    %111 = vsyncpa [#allocation1], 1

// kernel: neural_net_forward.1
$region0: #{neural_net_forward.1}
  #allocation0 [shape = 'u32[]', space=smem, size = 0x4, offset = 0x4, fixed_abs, tag = 'smem constant byte address 0x4 - core index']
  #allocation1 [shape = 'u32[72,128]{1,0:T(1,128)}', space=vmem, size = 0x9000, scoped, tag = 'internal scratch']
  %s0 = inlined_call_operand.vmem [shape: f32[16,20], index: 0, kind: input, shape index: {}]
  %s1 = inlined_call_operand.vmem [shape: f32[128,1], index: 1, kind: input, shape index: {}]
  %s2 = inlined_call_operand.vmem [shape: f32[33,96], index: 2, kind: input, shape index: {}]
  %s3 = inlined_call_operand.vmem [shape: f32[96,96], index: 3, kind: input, shape index: {}]
  %s4 = inlined_call_operand.vmem [shape: f32[2,128], index: 4, kind: output, shape index: {}]
  %s5 = sld [smem:[#allocation0]]
  $region26: #{neural_net_forward.1} parent=0
    _
  %s7 = ssub.s32 1, %s5
  %s8 = scalar_select 0, %s7, %s5
  // Predicated region
  $region2: #{neural_net_forward.1} parent=0 // pred_check
    _
  $region3: #{neural_net_forward.1} parent=0 // pred_check_branch
    %10 = sbr.rel (0) target = $region5
  $region4: #{neural_net_forward.1} parent=0 // pred_region
    _
  $region5: #{neural_net_forward.1} parent=0 // pred_fallthru
    _
  // Predicated region
  $region6: #{neural_net_forward.1} parent=0 // pred_check
    _
  $region7: #{neural_net_forward.1} parent=0 // pred_check_branch
    %12 = sbr.rel (0) target = $region9
  $region8: #{neural_net_forward.1} parent=0 // pred_region
    _
  $region9: #{neural_net_forward.1} parent=0 // pred_fallthru
    _
  // Predicated region
  $region10: #{neural_net_forward.1} parent=0 // pred_check
    _
  $region11: #{neural_net_forward.1} parent=0 // pred_check_branch
    %14 = sbr.rel (0) target = $region13
  $region12: #{neural_net_forward.1} parent=0 // pred_region
    _
  $region13: #{neural_net_forward.1} parent=0 // pred_fallthru
    _
  // Predicated region
  $region14: #{neural_net_forward.1} parent=0 // pred_check
    _
  $region15: #{neural_net_forward.1} parent=0 // pred_check_branch
    %16 = sbr.rel (0) target = $region17
  $region16: #{neural_net_forward.1} parent=0 // pred_region
    _
  $region17: #{neural_net_forward.1} parent=0 // pred_fallthru
    _
  %v17 = vld [vmem:[%s0] sm:$0xff]
  %v18 = vld [vmem:[%s0 + $0x8] sm:$0xff]
  %v19 = vld [vmem:[%s2] sm:$0xff]
  %v20 = vld [vmem:[%s2 + $0x8] sm:$0xff]
  %v21 = vld [vmem:[%s2 + $0x10] sm:$0xf]
  %v22 = vld [vmem:[%s2 + $0x14] sm:$0x1]
  %v23 = vperm.slane %v22, 0
  %vm24 = vcmask 162816
  %v26 = vsel %vm24, %v17, 0
  %v29 = vsel %vm24, %v18, 0
  %vm31 = vcmask 1043456
  %v33 = vsel %vm31, %v21, 0
  %35 = vmatpush.msra.mxu0 0.0
  %36 = vmatpush.msra.mxu0 0.0
  %37 = vmatpush.msra.mxu0 0.0
  %38 = vmatpush.msra.mxu0 0.0
  %39 = vmatpush.msra.mxu0 0.0
  %40 = vmatpush.msra.mxu0 0.0
  %41 = vmatpush.msra.mxu0 0.0
  %42 = vmatpush.msra.mxu0 0.0
  %43 = vmatpush.msra.mxu0 0.0
  %44 = vmatpush.msra.mxu0 0.0
  %45 = vmatpush.msra.mxu0 0.0
  %46 = vmatpush.msra.mxu0 0.0
  %47 = vmatpush.msra.mxu0 0.0
  %48 = vmatpush.msra.mxu0 %v33
  %49 = vmatpush.msra.mxu0 %v20
  %50 = vmatpush.msra.mxu0 %v19
  %51 = vmatmul.f32.gmra.mxu0 %v26
  %v52 = vpop.f32.mrf.mxu0
  %v53 = vadd.f32 %v23, %v52
  %54 = vmatmul.f32.gmra.mxu0 %v29
  %v55 = vpop.f32.mrf.mxu0
  %v56 = vadd.f32 %v23, %v55
  %57 = vdwg.mxu0
  %vm58 = vcmask 785408
  %v59 = vsel %vm58, %v53, 0.0
  %60 = vadd.xlane.f32.xlu0 %v59
  %v61 = vpop.xlane.xlu0 %60
  %v62 = vrot.slane %v61, 4
  %v63 = vadd.f32 %v61, %v62
  %v64 = vrot.slane %v63, 2
  %v65 = vadd.f32 %v63, %v64
  %v66 = vrot.slane %v65, 1
  %v67 = vadd.f32 %v65, %v66
  %s68 = vtos %v67
  %v69 = vrcp.pop 768.0
  %v70 = vmul.f32 768.0, %v69
  %v71 = vsub.f32 1.0, %v70
  %v72 = vmul.f32 %v69, %v71
  %v73 = vadd.f32 %v69, %v72
  %vm74 = vweird.f32 %v69
  %v75 = vsel %vm74, %v69, %v73
  %s76 = vtos %v75
  %s77 = smul.f32 %s68, %s76
  %v78 = vstv %s77
  %v79 = vsub.f32 %v53, %v78
  %v80 = vmul.f32 %v79, %v79
  %v81 = vsel %vm58, %v80, 0.0
  %82 = vadd.xlane.f32.xlu0 %v81
  %v83 = vpop.xlane.xlu0 %82
  %v84 = vrot.slane %v83, 4
  %v85 = vadd.f32 %v83, %v84
  %v86 = vrot.slane %v85, 2
  %v87 = vadd.f32 %v85, %v86
  %v88 = vrot.slane %v87, 1
  %v89 = vadd.f32 %v87, %v88
  %s90 = vtos %v89
  %v91 = vrcp.pop 768.0
  %v92 = vmul.f32 768.0, %v91
  %v93 = vsub.f32 1.0, %v92
  %v94 = vmul.f32 %v91, %v93
  %v95 = vadd.f32 %v91, %v94
  %vm96 = vweird.f32 %v91
  %v97 = vsel %vm96, %v91, %v95
  %s98 = vtos %v97
  %s99 = smul.f32 %s90, %s98
  %s100 = sadd.f32 %s99, 1e-05
  %v101 = vstv %s100
  %v102 = vrsqrt.pop %v101
  %v103 = vmul.f32 %v102, %v101
  %v104 = vmul.f32 %v103, %v102
  %v105 = vmul.f32 0.5, %v104
  %v106 = vsub.f32 1.5, %v105
  %v107 = vmul.f32 %v102, %v106
  %vm108 = vweird.f32 %v101
  %vm109 = vweird.f32 %v102
  %vm110 = vmor %vm108, %vm109
  %v111 = vsel %vm110, %v102, %v107
  %s112 = vtos %v111
  %v113 = vstv %s112
  %v114 = vmul.f32 %v79, %v113
  %v115 = vsel %vm58, %v56, 0.0
  %116 = vadd.xlane.f32.xlu0 %v115
  %v117 = vpop.xlane.xlu0 %116
  %v118 = vrot.slane %v117, 4
  %v119 = vadd.f32 %v117, %v118
  %v120 = vrot.slane %v119, 2
  %v121 = vadd.f32 %v119, %v120
  %v122 = vrot.slane %v121, 1
  %v123 = vadd.f32 %v121, %v122
  %s124 = vtos %v123
  %v125 = vrcp.pop 768.0
  %v126 = vmul.f32 768.0, %v125
  %v127 = vsub.f32 1.0, %v126
  %v128 = vmul.f32 %v125, %v127
  %v129 = vadd.f32 %v125, %v128
  %vm130 = vweird.f32 %v125
  %v131 = vsel %vm130, %v125, %v129
  %s132 = vtos %v131
  %s133 = smul.f32 %s124, %s132
  %v134 = vstv %s133
  %v135 = vsub.f32 %v56, %v134
  %v136 = vmul.f32 %v135, %v135
  %v137 = vsel %vm58, %v136, 0.0
  %138 = vadd.xlane.f32.xlu0 %v137
  %v139 = vpop.xlane.xlu0 %138
  %v140 = vrot.slane %v139, 4
  %v141 = vadd.f32 %v139, %v140
  %v142 = vrot.slane %v141, 2
  %v143 = vadd.f32 %v141, %v142
  %v144 = vrot.slane %v143, 1
  %v145 = vadd.f32 %v143, %v144
  %s146 = vtos %v145
  %v147 = vrcp.pop 768.0
  %v148 = vmul.f32 768.0, %v147
  %v149 = vsub.f32 1.0, %v148
  %v150 = vmul.f32 %v147, %v149
  %v151 = vadd.f32 %v147, %v150
  %vm152 = vweird.f32 %v147
  %v153 = vsel %vm152, %v147, %v151
  %s154 = vtos %v153
  %s155 = smul.f32 %s146, %s154
  %s156 = sadd.f32 %s155, 1e-05
  %v157 = vstv %s156
  %v158 = vrsqrt.pop %v157
  %v159 = vmul.f32 %v158, %v157
  %v160 = vmul.f32 %v159, %v158
  %v161 = vmul.f32 0.5, %v160
  %v162 = vsub.f32 1.5, %v161
  %v163 = vmul.f32 %v158, %v162
  %vm164 = vweird.f32 %v157
  %vm165 = vweird.f32 %v158
  %vm166 = vmor %vm164, %vm165
  %v167 = vsel %vm166, %v158, %v163
  %s168 = vtos %v167
  %v169 = vstv %s168
  %v170 = vmul.f32 %v135, %v169
  %v171 = vld [vmem:[%s2 + $0x15] sm:$0x1]
  %v172 = vperm.slane %v171, 0
  %v173 = vmul.f32 %v114, %v172
  %v174 = vmul.f32 %v170, %v172
  %v175 = vld [vmem:[%s2 + $0x16] sm:$0x1]
  %v176 = vperm.slane %v175, 0
  %v177 = vadd.f32 %v173, %v176
  %v178 = vadd.f32 %v174, %v176
  %vm179 = vcmp.gt.f32.partialorder %v177, 0.0
  %vm180 = vcmp.gt.f32.partialorder %v178, 0.0
  %v181 = vmin.f32 %v177, 0.0
  %v182 = vmin.f32 %v178, 0.0
  %v183 = vmul.f32 %v181, 1.442695
  %v184 = vpow.pop %v183
  %v185 = vmul.f32 %v182, 1.442695
  %v186 = vpow.pop %v185
  %v187 = vsub.f32 %v184, 1.0
  %v188 = vsub.f32 %v186, 1.0
  %v189 = vsel %vm179, %v177, %v187
  %v190 = vsel %vm180, %v178, %v188
  %v191 = vld [vmem:[%s3] sm:$0xff]
  %v192 = vld [vmem:[%s3 + $0x8] sm:$0xff]
  %v193 = vld [vmem:[%s3 + $0x10] sm:$0xff]
  %v194 = vld [vmem:[%s3 + $0x18] sm:$0xff]
  %v195 = vld [vmem:[%s3 + $0x20] sm:$0xff]
  %v196 = vld [vmem:[%s3 + $0x28] sm:$0xff]
  %v197 = vld [vmem:[%s3 + $0x30] sm:$0xff]
  %v198 = vld [vmem:[%s3 + $0x38] sm:$0xff]
  %v199 = vld [vmem:[%s3 + $0x40] sm:$0xff]
  %v200 = vld [vmem:[%s3 + $0x48] sm:$0xff]
  %v201 = vld [vmem:[%s3 + $0x50] sm:$0xff]
  %v202 = vld [vmem:[%s3 + $0x58] sm:$0xff]
  %v204 = vsel %vm58, %v189, 0
  %v207 = vsel %vm58, %v190, 0
  %209 = vmatpush.msra.mxu0 0.0
  %210 = vmatpush.msra.mxu0 0.0
  %211 = vmatpush.msra.mxu0 0.0
  %212 = vmatpush.msra.mxu0 0.0
  %213 = vmatpush.msra.mxu0 %v202
  %214 = vmatpush.msra.mxu0 %v201
  %215 = vmatpush.msra.mxu0 %v200
  %216 = vmatpush.msra.mxu0 %v199
  %217 = vmatpush.msra.mxu0 %v198
  %218 = vmatpush.msra.mxu0 %v197
  %219 = vmatpush.msra.mxu0 %v196
  %220 = vmatpush.msra.mxu0 %v195
  %221 = vmatpush.msra.mxu0 %v194
  %222 = vmatpush.msra.mxu0 %v193
  %223 = vmatpush.msra.mxu0 %v192
  %224 = vmatpush.msra.mxu0 %v191
  %225 = vmatmul.f32.gmra.mxu0 %v204
  %v226 = vpop.f32.mrf.mxu0
  %v227 = vadd.f32 0.0, %v226
  %228 = vmatmul.f32.gmra.mxu0 %v207
  %v229 = vpop.f32.mrf.mxu0
  %v230 = vadd.f32 0.0, %v229
  %231 = vdwg.mxu0
  %v232 = vld [vmem:[%s2 + $0x1c] sm:$0x1]
  %v233 = vperm.slane %v232, 0
  %235 = vrot.lane.b32.xlu0 %v233, 64
  %v236 = vpop.permute.xlu0 %235
  %v238 = vadd.f32 %v227, %v236
  %v239 = vadd.f32 %v230, %v236
  %v240 = vlaneseq
  %v241 = vshrl.u32 %v240, 7
  %v242 = vlaneseq
  %v243 = vand.u32 %v242, 127
  %vm244 = vcmp.gt.s32.totalorder %v243, %v241
  %v245 = vsel %vm244, 1, 0
  %v246 = vcvt.s32.f32 %v245
  %v247 = vperm.slane %v246, 0
  %v248 = vlaneseq
  %v249 = vshrl.u32 %v248, 7
  %251 = vset.pattern.permute.xlu0 %v249
  %252 = vperm.xlu0 %251, %v247
  %v253 = vpop.permute.xlu0 %252
  %v254 = vperm.slane %v246, 1
  %v255 = vlaneseq
  %v256 = vshrl.u32 %v255, 7
  %258 = vset.pattern.permute.xlu0 %v256
  %259 = vperm.xlu0 %258, %v254
  %v260 = vpop.permute.xlu0 %259
  %v261 = vperm.slane %v246, 2
  %v262 = vlaneseq
  %v263 = vshrl.u32 %v262, 7
  %265 = vset.pattern.permute.xlu0 %v263
  %266 = vperm.xlu0 %265, %v261
  %v267 = vpop.permute.xlu0 %266
  %v268 = vperm.slane %v246, 3
  %v269 = vlaneseq
  %v270 = vshrl.u32 %v269, 7
  %272 = vset.pattern.permute.xlu0 %v270
  %273 = vperm.xlu0 %272, %v268
  %v274 = vpop.permute.xlu0 %273
  %v275 = vperm.slane %v246, 4
  %v276 = vlaneseq
  %v277 = vshrl.u32 %v276, 7
  %279 = vset.pattern.permute.xlu0 %v277
  %280 = vperm.xlu0 %279, %v275
  %v281 = vpop.permute.xlu0 %280
  %v282 = vperm.slane %v246, 5
  %v283 = vlaneseq
  %v284 = vshrl.u32 %v283, 7
  %286 = vset.pattern.permute.xlu0 %v284
  %287 = vperm.xlu0 %286, %v282
  %v288 = vpop.permute.xlu0 %287
  %v289 = vperm.slane %v246, 6
  %v290 = vlaneseq
  %v291 = vshrl.u32 %v290, 7
  %293 = vset.pattern.permute.xlu0 %v291
  %294 = vperm.xlu0 %293, %v289
  %v295 = vpop.permute.xlu0 %294
  %v296 = vperm.slane %v246, 7
  %v297 = vlaneseq
  %v298 = vshrl.u32 %v297, 7
  %300 = vset.pattern.permute.xlu0 %v298
  %301 = vperm.xlu0 %300, %v296
  %v302 = vpop.permute.xlu0 %301
  %v304 = vrot.slane %v227, 1
  %v305 = vrot.slane %v227, 2
  %v306 = vrot.slane %v227, 3
  %v307 = vrot.slane %v227, 4
  %v308 = vrot.slane %v227, 5
  %v309 = vrot.slane %v227, 6
  %v310 = vrot.slane %v227, 7
  %v311 = vperm.slane %v227, 0
  %v312 = vperm.slane %v304, 0
  %v313 = vperm.slane %v305, 0
  %v314 = vperm.slane %v306, 0
  %v315 = vperm.slane %v307, 0
  %v316 = vperm.slane %v308, 0
  %v317 = vperm.slane %v309, 0
  %v318 = vperm.slane %v310, 0
  %327 = vrot.lane.b32.xlu0 %v227, 96
  %v328 = vpop.permute.xlu0 %327
  %v330 = vadd.f32 %v311, %v328
  %v331 = vadd.f32 %v312, %v328
  %v332 = vadd.f32 %v313, %v328
  %v333 = vadd.f32 %v314, %v328
  %v334 = vadd.f32 %v315, %v328
  %v335 = vadd.f32 %v316, %v328
  %v336 = vadd.f32 %v317, %v328
  %v337 = vadd.f32 %v318, %v328
  %v338 = vmul.f32 %v253, %v330
  %v339 = vmul.f32 %v260, %v331
  %v340 = vmul.f32 %v267, %v332
  %v341 = vmul.f32 %v274, %v333
  %v342 = vmul.f32 %v281, %v334
  %v343 = vmul.f32 %v288, %v335
  %v344 = vmul.f32 %v295, %v336
  %v345 = vmul.f32 %v302, %v337
  %v347 = vrot.slane %v230, 1
  %v348 = vrot.slane %v230, 2
  %v349 = vrot.slane %v230, 3
  %v350 = vrot.slane %v230, 4
  %v351 = vrot.slane %v230, 5
  %v352 = vrot.slane %v230, 6
  %v353 = vrot.slane %v230, 7
  %v354 = vperm.slane %v230, 0
  %v355 = vperm.slane %v347, 0
  %v356 = vperm.slane %v348, 0
  %v357 = vperm.slane %v349, 0
  %v358 = vperm.slane %v350, 0
  %v359 = vperm.slane %v351, 0
  %v360 = vperm.slane %v352, 0
  %v361 = vperm.slane %v353, 0
  %370 = vrot.lane.b32.xlu0 %v230, 96
  %v371 = vpop.permute.xlu0 %370
  %v373 = vadd.f32 %v354, %v371
  %v374 = vadd.f32 %v355, %v371
  %v375 = vadd.f32 %v356, %v371
  %v376 = vadd.f32 %v357, %v371
  %v377 = vadd.f32 %v358, %v371
  %v378 = vadd.f32 %v359, %v371
  %v379 = vadd.f32 %v360, %v371
  %v380 = vadd.f32 %v361, %v371
  %v381 = vmul.f32 %v253, %v373
  %v382 = vmul.f32 %v260, %v374
  %v383 = vmul.f32 %v267, %v375
  %v384 = vmul.f32 %v274, %v376
  %v385 = vmul.f32 %v281, %v377
  %v386 = vmul.f32 %v288, %v378
  %v387 = vmul.f32 %v295, %v379
  %v388 = vmul.f32 %v302, %v380
  %v389 = vld [vmem:[%s1] sm:$0xff]
  %v390 = vld [vmem:[%s1 + $0x8] sm:$0xff]
  %v391 = vld [vmem:[%s1 + $0x10] sm:$0xff]
  %v392 = vld [vmem:[%s1 + $0x18] sm:$0xff]
  %v393 = vld [vmem:[%s1 + $0x20] sm:$0xff]
  %v394 = vld [vmem:[%s1 + $0x28] sm:$0xff]
  %v395 = vld [vmem:[%s1 + $0x30] sm:$0xff]
  %v396 = vld [vmem:[%s1 + $0x38] sm:$0xff]
  %v397 = vld [vmem:[%s1 + $0x40] sm:$0xff]
  %v398 = vld [vmem:[%s1 + $0x48] sm:$0xff]
  %v399 = vld [vmem:[%s1 + $0x50] sm:$0xff]
  %v400 = vld [vmem:[%s1 + $0x58] sm:$0xff]
  %v401 = vld [vmem:[%s1 + $0x60] sm:$0xff]
  %v402 = vld [vmem:[%s1 + $0x68] sm:$0xff]
  %v403 = vld [vmem:[%s1 + $0x70] sm:$0xff]
  %v404 = vld [vmem:[%s1 + $0x78] sm:$0xff]
  %v405 = vld [vmem:[%s2 + $0x17] sm:$0x1]
  %407 = vset.pattern.permute.xlu0 0
  %408 = vperm.xlu0 %407, %v389
  %v409 = vpop.permute.xlu0 %408
  %412 = vset.pattern.permute.xlu0 0
  %413 = vperm.xlu0 %412, %v390
  %v414 = vpop.permute.xlu0 %413
  %417 = vset.pattern.permute.xlu0 0
  %418 = vperm.xlu0 %417, %v391
  %v419 = vpop.permute.xlu0 %418
  %422 = vset.pattern.permute.xlu0 0
  %423 = vperm.xlu0 %422, %v392
  %v424 = vpop.permute.xlu0 %423
  %427 = vset.pattern.permute.xlu0 0
  %428 = vperm.xlu0 %427, %v393
  %v429 = vpop.permute.xlu0 %428
  %432 = vset.pattern.permute.xlu0 0
  %433 = vperm.xlu0 %432, %v394
  %v434 = vpop.permute.xlu0 %433
  %437 = vset.pattern.permute.xlu0 0
  %438 = vperm.xlu0 %437, %v395
  %v439 = vpop.permute.xlu0 %438
  %442 = vset.pattern.permute.xlu0 0
  %443 = vperm.xlu0 %442, %v396
  %v444 = vpop.permute.xlu0 %443
  %447 = vset.pattern.permute.xlu0 0
  %448 = vperm.xlu0 %447, %v397
  %v449 = vpop.permute.xlu0 %448
  %452 = vset.pattern.permute.xlu0 0
  %453 = vperm.xlu0 %452, %v398
  %v454 = vpop.permute.xlu0 %453
  %457 = vset.pattern.permute.xlu0 0
  %458 = vperm.xlu0 %457, %v399
  %v459 = vpop.permute.xlu0 %458
  %462 = vset.pattern.permute.xlu0 0
  %463 = vperm.xlu0 %462, %v400
  %v464 = vpop.permute.xlu0 %463
  %467 = vset.pattern.permute.xlu0 0
  %468 = vperm.xlu0 %467, %v401
  %v469 = vpop.permute.xlu0 %468
  %472 = vset.pattern.permute.xlu0 0
  %473 = vperm.xlu0 %472, %v402
  %v474 = vpop.permute.xlu0 %473
  %477 = vset.pattern.permute.xlu0 0
  %478 = vperm.xlu0 %477, %v403
  %v479 = vpop.permute.xlu0 %478
  %482 = vset.pattern.permute.xlu0 0
  %483 = vperm.xlu0 %482, %v404
  %v484 = vpop.permute.xlu0 %483
  %v486 = vperm.slane %v405, 0
  %v487 = vmul.f32 %v409, %v486
  %v488 = vmul.f32 %v414, %v486
  %v489 = vmul.f32 %v419, %v486
  %v490 = vmul.f32 %v424, %v486
  %v491 = vmul.f32 %v429, %v486
  %v492 = vmul.f32 %v434, %v486
  %v493 = vmul.f32 %v439, %v486
  %v494 = vmul.f32 %v444, %v486
  %v495 = vmul.f32 %v449, %v486
  %v496 = vmul.f32 %v454, %v486
  %v497 = vmul.f32 %v459, %v486
  %v498 = vmul.f32 %v464, %v486
  %v499 = vmul.f32 %v469, %v486
  %v500 = vmul.f32 %v474, %v486
  %v501 = vmul.f32 %v479, %v486
  %v502 = vmul.f32 %v484, %v486
  %v503 = vadd.f32 %v338, %v487
  %v504 = vadd.f32 %v339, %v488
  %v505 = vadd.f32 %v340, %v489
  %v506 = vadd.f32 %v341, %v490
  %v507 = vadd.f32 %v342, %v491
  %v508 = vadd.f32 %v343, %v492
  %v509 = vadd.f32 %v344, %v493
  %v510 = vadd.f32 %v345, %v494
  %v511 = vadd.f32 %v381, %v495
  %v512 = vadd.f32 %v382, %v496
  %v513 = vadd.f32 %v383, %v497
  %v514 = vadd.f32 %v384, %v498
  %v515 = vadd.f32 %v385, %v499
  %v516 = vadd.f32 %v386, %v500
  %v517 = vadd.f32 %v387, %v501
  %v518 = vadd.f32 %v388, %v502
  %v519 = vld [vmem:[%s2 + $0x18] sm:$0x1]
  %v520 = vperm.slane %v519, 0
  %v521 = vadd.f32 %v503, %v520
  %v522 = vadd.f32 %v504, %v520
  %v523 = vadd.f32 %v505, %v520
  %v524 = vadd.f32 %v506, %v520
  %v525 = vadd.f32 %v507, %v520
  %v526 = vadd.f32 %v508, %v520
  %v527 = vadd.f32 %v509, %v520
  %v528 = vadd.f32 %v510, %v520
  %v529 = vadd.f32 %v511, %v520
  %v530 = vadd.f32 %v512, %v520
  %v531 = vadd.f32 %v513, %v520
  %v532 = vadd.f32 %v514, %v520
  %v533 = vadd.f32 %v515, %v520
  %v534 = vadd.f32 %v516, %v520
  %v535 = vadd.f32 %v517, %v520
  %v536 = vadd.f32 %v518, %v520
  %539 = vrot.lane.b32.xlu0 %v238, 64
  %v540 = vpop.permute.xlu0 %539
  %541 = vrot.lane.b32.xlu0 %v239, 64
  %v542 = vpop.permute.xlu0 %541
  %vm545 = vcmask 261120
  %v546 = vsel %vm545, %v521, 0.0
  %547 = vadd.xlane.f32.xlu0 %v546
  %v548 = vpop.xlane.xlu0 %547
  %v549 = vsel %vm545, %v522, 0.0
  %550 = vadd.xlane.f32.xlu0 %v549
  %v551 = vpop.xlane.xlu0 %550
  %v552 = vsel %vm545, %v523, 0.0
  %553 = vadd.xlane.f32.xlu0 %v552
  %v554 = vpop.xlane.xlu0 %553
  %v555 = vsel %vm545, %v524, 0.0
  %556 = vadd.xlane.f32.xlu0 %v555
  %v557 = vpop.xlane.xlu0 %556
  %v558 = vsel %vm545, %v525, 0.0
  %559 = vadd.xlane.f32.xlu0 %v558
  %v560 = vpop.xlane.xlu0 %559
  %v561 = vsel %vm545, %v526, 0.0
  %562 = vadd.xlane.f32.xlu0 %v561
  %v563 = vpop.xlane.xlu0 %562
  %v564 = vsel %vm545, %v527, 0.0
  %565 = vadd.xlane.f32.xlu0 %v564
  %v566 = vpop.xlane.xlu0 %565
  %v567 = vsel %vm545, %v528, 0.0
  %568 = vadd.xlane.f32.xlu0 %v567
  %v569 = vpop.xlane.xlu0 %568
  %v570 = vsel %vm545, %v529, 0.0
  %571 = vadd.xlane.f32.xlu0 %v570
  %v572 = vpop.xlane.xlu0 %571
  %v573 = vsel %vm545, %v530, 0.0
  %574 = vadd.xlane.f32.xlu0 %v573
  %v575 = vpop.xlane.xlu0 %574
  %v576 = vsel %vm545, %v531, 0.0
  %577 = vadd.xlane.f32.xlu0 %v576
  %v578 = vpop.xlane.xlu0 %577
  %v579 = vsel %vm545, %v532, 0.0
  %580 = vadd.xlane.f32.xlu0 %v579
  %v581 = vpop.xlane.xlu0 %580
  %v582 = vsel %vm545, %v533, 0.0
  %583 = vadd.xlane.f32.xlu0 %v582
  %v584 = vpop.xlane.xlu0 %583
  %v585 = vsel %vm545, %v534, 0.0
  %586 = vadd.xlane.f32.xlu0 %v585
  %v587 = vpop.xlane.xlu0 %586
  %v588 = vsel %vm545, %v535, 0.0
  %589 = vadd.xlane.f32.xlu0 %v588
  %v590 = vpop.xlane.xlu0 %589
  %v591 = vsel %vm545, %v536, 0.0
  %592 = vadd.xlane.f32.xlu0 %v591
  %v593 = vpop.xlane.xlu0 %592
  %v594 = vsel %vm545, %v540, 0.0
  %595 = vadd.xlane.f32.xlu0 %v594
  %v596 = vpop.xlane.xlu0 %595
  %v597 = vsel %vm545, %v542, 0.0
  %598 = vadd.xlane.f32.xlu0 %v597
  %v599 = vpop.xlane.xlu0 %598
  %v600 = vrcp.pop 32.0
  %v601 = vmul.f32 32.0, %v600
  %v602 = vsub.f32 1.0, %v601
  %v603 = vmul.f32 %v600, %v602
  %v604 = vadd.f32 %v600, %v603
  %vm605 = vweird.f32 %v600
  %v606 = vsel %vm605, %v600, %v604
  %v607 = vmul.f32 %v548, %v606
  %v608 = vmul.f32 %v551, %v606
  %v609 = vmul.f32 %v554, %v606
  %v610 = vmul.f32 %v557, %v606
  %v611 = vmul.f32 %v560, %v606
  %v612 = vmul.f32 %v563, %v606
  %v613 = vmul.f32 %v566, %v606
  %v614 = vmul.f32 %v569, %v606
  %v615 = vmul.f32 %v572, %v606
  %v616 = vmul.f32 %v575, %v606
  %v617 = vmul.f32 %v578, %v606
  %v618 = vmul.f32 %v581, %v606
  %v619 = vmul.f32 %v584, %v606
  %v620 = vmul.f32 %v587, %v606
  %v621 = vmul.f32 %v590, %v606
  %v622 = vmul.f32 %v593, %v606
  %v623 = vmul.f32 %v596, %v606
  %v624 = vmul.f32 %v599, %v606
  %v625 = vsub.f32 %v521, %v607
  %v626 = vsub.f32 %v522, %v608
  %v627 = vsub.f32 %v523, %v609
  %v628 = vsub.f32 %v524, %v610
  %v629 = vsub.f32 %v525, %v611
  %v630 = vsub.f32 %v526, %v612
  %v631 = vsub.f32 %v527, %v613
  %v632 = vsub.f32 %v528, %v614
  %v633 = vsub.f32 %v529, %v615
  %v634 = vsub.f32 %v530, %v616
  %v635 = vsub.f32 %v531, %v617
  %v636 = vsub.f32 %v532, %v618
  %v637 = vsub.f32 %v533, %v619
  %v638 = vsub.f32 %v534, %v620
  %v639 = vsub.f32 %v535, %v621
  %v640 = vsub.f32 %v536, %v622
  %v641 = vsub.f32 %v540, %v623
  %v642 = vsub.f32 %v542, %v624
  %v643 = vmul.f32 %v625, %v625
  %v644 = vmul.f32 %v626, %v626
  %v645 = vmul.f32 %v627, %v627
  %v646 = vmul.f32 %v628, %v628
  %v647 = vmul.f32 %v629, %v629
  %v648 = vmul.f32 %v630, %v630
  %v649 = vmul.f32 %v631, %v631
  %v650 = vmul.f32 %v632, %v632
  %v651 = vmul.f32 %v633, %v633
  %v652 = vmul.f32 %v634, %v634
  %v653 = vmul.f32 %v635, %v635
  %v654 = vmul.f32 %v636, %v636
  %v655 = vmul.f32 %v637, %v637
  %v656 = vmul.f32 %v638, %v638
  %v657 = vmul.f32 %v639, %v639
  %v658 = vmul.f32 %v640, %v640
  %v659 = vmul.f32 %v641, %v641
  %v660 = vmul.f32 %v642, %v642
  %v661 = vsel %vm545, %v643, 0.0
  %662 = vadd.xlane.f32.xlu0 %v661
  %v663 = vpop.xlane.xlu0 %662
  %v664 = vsel %vm545, %v644, 0.0
  %665 = vadd.xlane.f32.xlu0 %v664
  %v666 = vpop.xlane.xlu0 %665
  %v667 = vsel %vm545, %v645, 0.0
  %668 = vadd.xlane.f32.xlu0 %v667
  %v669 = vpop.xlane.xlu0 %668
  %v670 = vsel %vm545, %v646, 0.0
  %671 = vadd.xlane.f32.xlu0 %v670
  %v672 = vpop.xlane.xlu0 %671
  %v673 = vsel %vm545, %v647, 0.0
  %674 = vadd.xlane.f32.xlu0 %v673
  %v675 = vpop.xlane.xlu0 %674
  %v676 = vsel %vm545, %v648, 0.0
  %677 = vadd.xlane.f32.xlu0 %v676
  %v678 = vpop.xlane.xlu0 %677
  %v679 = vsel %vm545, %v649, 0.0
  %680 = vadd.xlane.f32.xlu0 %v679
  %v681 = vpop.xlane.xlu0 %680
  %v682 = vsel %vm545, %v650, 0.0
  %683 = vadd.xlane.f32.xlu0 %v682
  %v684 = vpop.xlane.xlu0 %683
  %v685 = vsel %vm545, %v651, 0.0
  %686 = vadd.xlane.f32.xlu0 %v685
  %v687 = vpop.xlane.xlu0 %686
  %v688 = vsel %vm545, %v652, 0.0
  %689 = vadd.xlane.f32.xlu0 %v688
  %v690 = vpop.xlane.xlu0 %689
  %v691 = vsel %vm545, %v653, 0.0
  %692 = vadd.xlane.f32.xlu0 %v691
  %v693 = vpop.xlane.xlu0 %692
  %v694 = vsel %vm545, %v654, 0.0
  %695 = vadd.xlane.f32.xlu0 %v694
  %v696 = vpop.xlane.xlu0 %695
  %v697 = vsel %vm545, %v655, 0.0
  %698 = vadd.xlane.f32.xlu0 %v697
  %v699 = vpop.xlane.xlu0 %698
  %v700 = vsel %vm545, %v656, 0.0
  %701 = vadd.xlane.f32.xlu0 %v700
  %v702 = vpop.xlane.xlu0 %701
  %v703 = vsel %vm545, %v657, 0.0
  %704 = vadd.xlane.f32.xlu0 %v703
  %v705 = vpop.xlane.xlu0 %704
  %v706 = vsel %vm545, %v658, 0.0
  %707 = vadd.xlane.f32.xlu0 %v706
  %v708 = vpop.xlane.xlu0 %707
  %v709 = vsel %vm545, %v659, 0.0
  %710 = vadd.xlane.f32.xlu0 %v709
  %v711 = vpop.xlane.xlu0 %710
  %v712 = vsel %vm545, %v660, 0.0
  %713 = vadd.xlane.f32.xlu0 %v712
  %v714 = vpop.xlane.xlu0 %713
  %v715 = vmul.f32 %v663, %v606
  %v716 = vmul.f32 %v666, %v606
  %v717 = vmul.f32 %v669, %v606
  %v718 = vmul.f32 %v672, %v606
  %v719 = vmul.f32 %v675, %v606
  %v720 = vmul.f32 %v678, %v606
  %v721 = vmul.f32 %v681, %v606
  %v722 = vmul.f32 %v684, %v606
  %v723 = vmul.f32 %v687, %v606
  %v724 = vmul.f32 %v690, %v606
  %v725 = vmul.f32 %v693, %v606
  %v726 = vmul.f32 %v696, %v606
  %v727 = vmul.f32 %v699, %v606
  %v728 = vmul.f32 %v702, %v606
  %v729 = vmul.f32 %v705, %v606
  %v730 = vmul.f32 %v708, %v606
  %v731 = vmul.f32 %v711, %v606
  %v732 = vmul.f32 %v714, %v606
  %v733 = vadd.f32 %v715, 1e-05
  %v734 = vadd.f32 %v716, 1e-05
  %v735 = vadd.f32 %v717, 1e-05
  %v736 = vadd.f32 %v718, 1e-05
  %v737 = vadd.f32 %v719, 1e-05
  %v738 = vadd.f32 %v720, 1e-05
  %v739 = vadd.f32 %v721, 1e-05
  %v740 = vadd.f32 %v722, 1e-05
  %v741 = vadd.f32 %v723, 1e-05
  %v742 = vadd.f32 %v724, 1e-05
  %v743 = vadd.f32 %v725, 1e-05
  %v744 = vadd.f32 %v726, 1e-05
  %v745 = vadd.f32 %v727, 1e-05
  %v746 = vadd.f32 %v728, 1e-05
  %v747 = vadd.f32 %v729, 1e-05
  %v748 = vadd.f32 %v730, 1e-05
  %v749 = vadd.f32 %v731, 1e-05
  %v750 = vadd.f32 %v732, 1e-05
  %v751 = vrsqrt.pop %v733
  %v752 = vmul.f32 %v751, %v733
  %v753 = vmul.f32 %v752, %v751
  %v754 = vmul.f32 0.5, %v753
  %v755 = vsub.f32 1.5, %v754
  %v756 = vmul.f32 %v751, %v755
  %vm757 = vweird.f32 %v733
  %vm758 = vweird.f32 %v751
  %vm759 = vmor %vm757, %vm758
  %v760 = vsel %vm759, %v751, %v756
  %v761 = vrsqrt.pop %v734
  %v762 = vmul.f32 %v761, %v734
  %v763 = vmul.f32 %v762, %v761
  %v764 = vmul.f32 0.5, %v763
  %v765 = vsub.f32 1.5, %v764
  %v766 = vmul.f32 %v761, %v765
  %vm767 = vweird.f32 %v734
  %vm768 = vweird.f32 %v761
  %vm769 = vmor %vm767, %vm768
  %v770 = vsel %vm769, %v761, %v766
  %v771 = vrsqrt.pop %v735
  %v772 = vmul.f32 %v771, %v735
  %v773 = vmul.f32 %v772, %v771
  %v774 = vmul.f32 0.5, %v773
  %v775 = vsub.f32 1.5, %v774
  %v776 = vmul.f32 %v771, %v775
  %vm777 = vweird.f32 %v735
  %vm778 = vweird.f32 %v771
  %vm779 = vmor %vm777, %vm778
  %v780 = vsel %vm779, %v771, %v776
  %v781 = vrsqrt.pop %v736
  %v782 = vmul.f32 %v781, %v736
  %v783 = vmul.f32 %v782, %v781
  %v784 = vmul.f32 0.5, %v783
  %v785 = vsub.f32 1.5, %v784
  %v786 = vmul.f32 %v781, %v785
  %vm787 = vweird.f32 %v736
  %vm788 = vweird.f32 %v781
  %vm789 = vmor %vm787, %vm788
  %v790 = vsel %vm789, %v781, %v786
  %v791 = vrsqrt.pop %v737
  %v792 = vmul.f32 %v791, %v737
  %v793 = vmul.f32 %v792, %v791
  %v794 = vmul.f32 0.5, %v793
  %v795 = vsub.f32 1.5, %v794
  %v796 = vmul.f32 %v791, %v795
  %vm797 = vweird.f32 %v737
  %vm798 = vweird.f32 %v791
  %vm799 = vmor %vm797, %vm798
  %v800 = vsel %vm799, %v791, %v796
  %v801 = vrsqrt.pop %v738
  %v802 = vmul.f32 %v801, %v738
  %v803 = vmul.f32 %v802, %v801
  %v804 = vmul.f32 0.5, %v803
  %v805 = vsub.f32 1.5, %v804
  %v806 = vmul.f32 %v801, %v805
  %vm807 = vweird.f32 %v738
  %vm808 = vweird.f32 %v801
  %vm809 = vmor %vm807, %vm808
  %v810 = vsel %vm809, %v801, %v806
  %v811 = vrsqrt.pop %v739
  %v812 = vmul.f32 %v811, %v739
  %v813 = vmul.f32 %v812, %v811
  %v814 = vmul.f32 0.5, %v813
  %v815 = vsub.f32 1.5, %v814
  %v816 = vmul.f32 %v811, %v815
  %vm817 = vweird.f32 %v739
  %vm818 = vweird.f32 %v811
  %vm819 = vmor %vm817, %vm818
  %v820 = vsel %vm819, %v811, %v816
  %v821 = vrsqrt.pop %v740
  %v822 = vmul.f32 %v821, %v740
  %v823 = vmul.f32 %v822, %v821
  %v824 = vmul.f32 0.5, %v823
  %v825 = vsub.f32 1.5, %v824
  %v826 = vmul.f32 %v821, %v825
  %vm827 = vweird.f32 %v740
  %vm828 = vweird.f32 %v821
  %vm829 = vmor %vm827, %vm828
  %v830 = vsel %vm829, %v821, %v826
  %v831 = vrsqrt.pop %v741
  %v832 = vmul.f32 %v831, %v741
  %v833 = vmul.f32 %v832, %v831
  %v834 = vmul.f32 0.5, %v833
  %v835 = vsub.f32 1.5, %v834
  %v836 = vmul.f32 %v831, %v835
  %vm837 = vweird.f32 %v741
  %vm838 = vweird.f32 %v831
  %vm839 = vmor %vm837, %vm838
  %v840 = vsel %vm839, %v831, %v836
  %v841 = vrsqrt.pop %v742
  %v842 = vmul.f32 %v841, %v742
  %v843 = vmul.f32 %v842, %v841
  %v844 = vmul.f32 0.5, %v843
  %v845 = vsub.f32 1.5, %v844
  %v846 = vmul.f32 %v841, %v845
  %vm847 = vweird.f32 %v742
  %vm848 = vweird.f32 %v841
  %vm849 = vmor %vm847, %vm848
  %v850 = vsel %vm849, %v841, %v846
  %v851 = vrsqrt.pop %v743
  %v852 = vmul.f32 %v851, %v743
  %v853 = vmul.f32 %v852, %v851
  %v854 = vmul.f32 0.5, %v853
  %v855 = vsub.f32 1.5, %v854
  %v856 = vmul.f32 %v851, %v855
  %vm857 = vweird.f32 %v743
  %vm858 = vweird.f32 %v851
  %vm859 = vmor %vm857, %vm858
  %v860 = vsel %vm859, %v851, %v856
  %v861 = vrsqrt.pop %v744
  %v862 = vmul.f32 %v861, %v744
  %v863 = vmul.f32 %v862, %v861
  %v864 = vmul.f32 0.5, %v863
  %v865 = vsub.f32 1.5, %v864
  %v866 = vmul.f32 %v861, %v865
  %vm867 = vweird.f32 %v744
  %vm868 = vweird.f32 %v861
  %vm869 = vmor %vm867, %vm868
  %v870 = vsel %vm869, %v861, %v866
  %v871 = vrsqrt.pop %v745
  %v872 = vmul.f32 %v871, %v745
  %v873 = vmul.f32 %v872, %v871
  %v874 = vmul.f32 0.5, %v873
  %v875 = vsub.f32 1.5, %v874
  %v876 = vmul.f32 %v871, %v875
  %vm877 = vweird.f32 %v745
  %vm878 = vweird.f32 %v871
  %vm879 = vmor %vm877, %vm878
  %v880 = vsel %vm879, %v871, %v876
  %v881 = vrsqrt.pop %v746
  %v882 = vmul.f32 %v881, %v746
  %v883 = vmul.f32 %v882, %v881
  %v884 = vmul.f32 0.5, %v883
  %v885 = vsub.f32 1.5, %v884
  %v886 = vmul.f32 %v881, %v885
  %vm887 = vweird.f32 %v746
  %vm888 = vweird.f32 %v881
  %vm889 = vmor %vm887, %vm888
  %v890 = vsel %vm889, %v881, %v886
  %v891 = vrsqrt.pop %v747
  %v892 = vmul.f32 %v891, %v747
  %v893 = vmul.f32 %v892, %v891
  %v894 = vmul.f32 0.5, %v893
  %v895 = vsub.f32 1.5, %v894
  %v896 = vmul.f32 %v891, %v895
  %vm897 = vweird.f32 %v747
  %vm898 = vweird.f32 %v891
  %vm899 = vmor %vm897, %vm898
  %v900 = vsel %vm899, %v891, %v896
  %v901 = vrsqrt.pop %v748
  %v902 = vmul.f32 %v901, %v748
  %v903 = vmul.f32 %v902, %v901
  %v904 = vmul.f32 0.5, %v903
  %v905 = vsub.f32 1.5, %v904
  %v906 = vmul.f32 %v901, %v905
  %vm907 = vweird.f32 %v748
  %vm908 = vweird.f32 %v901
  %vm909 = vmor %vm907, %vm908
  %v910 = vsel %vm909, %v901, %v906
  %v911 = vrsqrt.pop %v749
  %v912 = vmul.f32 %v911, %v749
  %v913 = vmul.f32 %v912, %v911
  %v914 = vmul.f32 0.5, %v913
  %v915 = vsub.f32 1.5, %v914
  %v916 = vmul.f32 %v911, %v915
  %vm917 = vweird.f32 %v749
  %vm918 = vweird.f32 %v911
  %vm919 = vmor %vm917, %vm918
  %v920 = vsel %vm919, %v911, %v916
  %v921 = vrsqrt.pop %v750
  %v922 = vmul.f32 %v921, %v750
  %v923 = vmul.f32 %v922, %v921
  %v924 = vmul.f32 0.5, %v923
  %v925 = vsub.f32 1.5, %v924
  %v926 = vmul.f32 %v921, %v925
  %vm927 = vweird.f32 %v750
  %vm928 = vweird.f32 %v921
  %vm929 = vmor %vm927, %vm928
  %v930 = vsel %vm929, %v921, %v926
  %v931 = vmul.f32 %v625, %v760
  %v932 = vmul.f32 %v626, %v770
  %v933 = vmul.f32 %v627, %v780
  %v934 = vmul.f32 %v628, %v790
  %v935 = vmul.f32 %v629, %v800
  %v936 = vmul.f32 %v630, %v810
  %v937 = vmul.f32 %v631, %v820
  %v938 = vmul.f32 %v632, %v830
  %v939 = vmul.f32 %v633, %v840
  %v940 = vmul.f32 %v634, %v850
  %v941 = vmul.f32 %v635, %v860
  %v942 = vmul.f32 %v636, %v870
  %v943 = vmul.f32 %v637, %v880
  %v944 = vmul.f32 %v638, %v890
  %v945 = vmul.f32 %v639, %v900
  %v946 = vmul.f32 %v640, %v910
  %v947 = vmul.f32 %v641, %v920
  %v948 = vmul.f32 %v642, %v930
  %v949 = vadd.s32 %v241, 8
  %v950 = vadd.s32 %v241, 16
  %v951 = vadd.s32 %v241, 24
  %v952 = vadd.s32 %v241, 32
  %v953 = vadd.s32 %v241, 40
  %v954 = vadd.s32 %v241, 48
  %v955 = vadd.s32 %v241, 56
  %v956 = vadd.s32 %v241, 64
  %v957 = vadd.s32 %v241, 72
  %v958 = vadd.s32 %v241, 80
  %v959 = vadd.s32 %v241, 88
  %v960 = vadd.s32 %v241, 96
  %v961 = vadd.s32 %v241, 104
  %v962 = vadd.s32 %v241, 112
  %v963 = vadd.s32 %v241, 120
  %v964 = vadd.s32 %v241, 128
  %v965 = vadd.s32 %v241, 136
  %vm966 = vcmp.lt.s32.totalorder %v241, 128
  %vm967 = vcmp.lt.s32.totalorder %v949, 128
  %vm968 = vcmp.lt.s32.totalorder %v950, 128
  %vm969 = vcmp.lt.s32.totalorder %v951, 128
  %vm970 = vcmp.lt.s32.totalorder %v952, 128
  %vm971 = vcmp.lt.s32.totalorder %v953, 128
  %vm972 = vcmp.lt.s32.totalorder %v954, 128
  %vm973 = vcmp.lt.s32.totalorder %v955, 128
  %vm974 = vcmp.lt.s32.totalorder %v956, 128
  %vm975 = vcmp.lt.s32.totalorder %v957, 128
  %vm976 = vcmp.lt.s32.totalorder %v958, 128
  %vm977 = vcmp.lt.s32.totalorder %v959, 128
  %vm978 = vcmp.lt.s32.totalorder %v960, 128
  %vm979 = vcmp.lt.s32.totalorder %v961, 128
  %vm980 = vcmp.lt.s32.totalorder %v962, 128
  %vm981 = vcmp.lt.s32.totalorder %v963, 128
  %vm982 = vcmp.lt.s32.totalorder %v964, 128
  %vm983 = vcmp.lt.s32.totalorder %v965, 128
  %v984 = vld [vmem:[%s2 + $0x19] sm:$0x1]
  %v985 = vld [vmem:[%s2 + $0x1d] sm:$0x1]
  %v986 = vsel %vm966, 1, 0
  %v987 = vsel %vm967, 1, 0
  %v988 = vsel %vm968, 1, 0
  %v989 = vsel %vm969, 1, 0
  %v990 = vsel %vm970, 1, 0
  %v991 = vsel %vm971, 1, 0
  %v992 = vsel %vm972, 1, 0
  %v993 = vsel %vm973, 1, 0
  %v994 = vsel %vm974, 1, 0
  %v995 = vsel %vm975, 1, 0
  %v996 = vsel %vm976, 1, 0
  %v997 = vsel %vm977, 1, 0
  %v998 = vsel %vm978, 1, 0
  %v999 = vsel %vm979, 1, 0
  %v1000 = vsel %vm980, 1, 0
  %v1001 = vsel %vm981, 1, 0
  %v1002 = vsel %vm982, 1, 0
  %v1003 = vsel %vm983, 1, 0
  %vm1004 = vcmp.eq.s32.totalorder %v986, 1
  %vm1005 = vcmp.eq.s32.totalorder %v987, 1
  %vm1006 = vcmp.eq.s32.totalorder %v988, 1
  %vm1007 = vcmp.eq.s32.totalorder %v989, 1
  %vm1008 = vcmp.eq.s32.totalorder %v990, 1
  %vm1009 = vcmp.eq.s32.totalorder %v991, 1
  %vm1010 = vcmp.eq.s32.totalorder %v992, 1
  %vm1011 = vcmp.eq.s32.totalorder %v993, 1
  %vm1012 = vcmp.eq.s32.totalorder %v994, 1
  %vm1013 = vcmp.eq.s32.totalorder %v995, 1
  %vm1014 = vcmp.eq.s32.totalorder %v996, 1
  %vm1015 = vcmp.eq.s32.totalorder %v997, 1
  %vm1016 = vcmp.eq.s32.totalorder %v998, 1
  %vm1017 = vcmp.eq.s32.totalorder %v999, 1
  %vm1018 = vcmp.eq.s32.totalorder %v1000, 1
  %vm1019 = vcmp.eq.s32.totalorder %v1001, 1
  %vm1020 = vcmp.eq.s32.totalorder %v1002, 1
  %vm1021 = vcmp.eq.s32.totalorder %v1003, 1
  %v1022 = vperm.slane %v984, 0
  %v1023 = vperm.slane %v985, 0
  %v1024 = vsel %vm1004, %v1022, %v1023
  %v1025 = vsel %vm1005, %v1022, %v1023
  %v1026 = vsel %vm1006, %v1022, %v1023
  %v1027 = vsel %vm1007, %v1022, %v1023
  %v1028 = vsel %vm1008, %v1022, %v1023
  %v1029 = vsel %vm1009, %v1022, %v1023
  %v1030 = vsel %vm1010, %v1022, %v1023
  %v1031 = vsel %vm1011, %v1022, %v1023
  %v1032 = vsel %vm1012, %v1022, %v1023
  %v1033 = vsel %vm1013, %v1022, %v1023
  %v1034 = vsel %vm1014, %v1022, %v1023
  %v1035 = vsel %vm1015, %v1022, %v1023
  %v1036 = vsel %vm1016, %v1022, %v1023
  %v1037 = vsel %vm1017, %v1022, %v1023
  %v1038 = vsel %vm1018, %v1022, %v1023
  %v1039 = vsel %vm1019, %v1022, %v1023
  %v1040 = vsel %vm1020, %v1022, %v1023
  %v1041 = vsel %vm1021, %v1022, %v1023
  %v1042 = vld [vmem:[%s2 + $0x1a] sm:$0x1]
  %v1043 = vld [vmem:[%s2 + $0x1e] sm:$0x1]
  %v1044 = vperm.slane %v1042, 0
  %v1045 = vperm.slane %v1043, 0
  %v1046 = vsel %vm1004, %v1044, %v1045
  %v1047 = vsel %vm1005, %v1044, %v1045
  %v1048 = vsel %vm1006, %v1044, %v1045
  %v1049 = vsel %vm1007, %v1044, %v1045
  %v1050 = vsel %vm1008, %v1044, %v1045
  %v1051 = vsel %vm1009, %v1044, %v1045
  %v1052 = vsel %vm1010, %v1044, %v1045
  %v1053 = vsel %vm1011, %v1044, %v1045
  %v1054 = vsel %vm1012, %v1044, %v1045
  %v1055 = vsel %vm1013, %v1044, %v1045
  %v1056 = vsel %vm1014, %v1044, %v1045
  %v1057 = vsel %vm1015, %v1044, %v1045
  %v1058 = vsel %vm1016, %v1044, %v1045
  %v1059 = vsel %vm1017, %v1044, %v1045
  %v1060 = vsel %vm1018, %v1044, %v1045
  %v1061 = vsel %vm1019, %v1044, %v1045
  %v1062 = vsel %vm1020, %v1044, %v1045
  %v1063 = vsel %vm1021, %v1044, %v1045
  %v1064 = vmul.f32 %v931, %v1024
  %v1065 = vmul.f32 %v932, %v1025
  %v1066 = vmul.f32 %v933, %v1026
  %v1067 = vmul.f32 %v934, %v1027
  %v1068 = vmul.f32 %v935, %v1028
  %v1069 = vmul.f32 %v936, %v1029
  %v1070 = vmul.f32 %v937, %v1030
  %v1071 = vmul.f32 %v938, %v1031
  %v1072 = vmul.f32 %v939, %v1032
  %v1073 = vmul.f32 %v940, %v1033
  %v1074 = vmul.f32 %v941, %v1034
  %v1075 = vmul.f32 %v942, %v1035
  %v1076 = vmul.f32 %v943, %v1036
  %v1077 = vmul.f32 %v944, %v1037
  %v1078 = vmul.f32 %v945, %v1038
  %v1079 = vmul.f32 %v946, %v1039
  %v1080 = vmul.f32 %v947, %v1040
  %v1081 = vmul.f32 %v948, %v1041
  %v1082 = vadd.f32 %v1064, %v1046
  %v1083 = vadd.f32 %v1065, %v1047
  %v1084 = vadd.f32 %v1066, %v1048
  %v1085 = vadd.f32 %v1067, %v1049
  %v1086 = vadd.f32 %v1068, %v1050
  %v1087 = vadd.f32 %v1069, %v1051
  %v1088 = vadd.f32 %v1070, %v1052
  %v1089 = vadd.f32 %v1071, %v1053
  %v1090 = vadd.f32 %v1072, %v1054
  %v1091 = vadd.f32 %v1073, %v1055
  %v1092 = vadd.f32 %v1074, %v1056
  %v1093 = vadd.f32 %v1075, %v1057
  %v1094 = vadd.f32 %v1076, %v1058
  %v1095 = vadd.f32 %v1077, %v1059
  %v1096 = vadd.f32 %v1078, %v1060
  %v1097 = vadd.f32 %v1079, %v1061
  %v1098 = vadd.f32 %v1080, %v1062
  %v1099 = vadd.f32 %v1081, %v1063
  %vm1100 = vcmp.gt.f32.partialorder %v1082, 0.0
  %vm1101 = vcmp.gt.f32.partialorder %v1083, 0.0
  %vm1102 = vcmp.gt.f32.partialorder %v1084, 0.0
  %vm1103 = vcmp.gt.f32.partialorder %v1085, 0.0
  %vm1104 = vcmp.gt.f32.partialorder %v1086, 0.0
  %vm1105 = vcmp.gt.f32.partialorder %v1087, 0.0
  %vm1106 = vcmp.gt.f32.partialorder %v1088, 0.0
  %vm1107 = vcmp.gt.f32.partialorder %v1089, 0.0
  %vm1108 = vcmp.gt.f32.partialorder %v1090, 0.0
  %vm1109 = vcmp.gt.f32.partialorder %v1091, 0.0
  %vm1110 = vcmp.gt.f32.partialorder %v1092, 0.0
  %vm1111 = vcmp.gt.f32.partialorder %v1093, 0.0
  %vm1112 = vcmp.gt.f32.partialorder %v1094, 0.0
  %vm1113 = vcmp.gt.f32.partialorder %v1095, 0.0
  %vm1114 = vcmp.gt.f32.partialorder %v1096, 0.0
  %vm1115 = vcmp.gt.f32.partialorder %v1097, 0.0
  %vm1116 = vcmp.gt.f32.partialorder %v1098, 0.0
  %vm1117 = vcmp.gt.f32.partialorder %v1099, 0.0
  %v1118 = vmin.f32 %v1082, 0.0
  %v1119 = vmin.f32 %v1083, 0.0
  %v1120 = vmin.f32 %v1084, 0.0
  %v1121 = vmin.f32 %v1085, 0.0
  %v1122 = vmin.f32 %v1086, 0.0
  %v1123 = vmin.f32 %v1087, 0.0
  %v1124 = vmin.f32 %v1088, 0.0
  %v1125 = vmin.f32 %v1089, 0.0
  %v1126 = vmin.f32 %v1090, 0.0
  %v1127 = vmin.f32 %v1091, 0.0
  %v1128 = vmin.f32 %v1092, 0.0
  %v1129 = vmin.f32 %v1093, 0.0
  %v1130 = vmin.f32 %v1094, 0.0
  %v1131 = vmin.f32 %v1095, 0.0
  %v1132 = vmin.f32 %v1096, 0.0
  %v1133 = vmin.f32 %v1097, 0.0
  %v1134 = vmin.f32 %v1098, 0.0
  %v1135 = vmin.f32 %v1099, 0.0
  %v1136 = vmul.f32 %v1118, 1.442695
  %v1137 = vpow.pop %v1136
  %v1138 = vmul.f32 %v1119, 1.442695
  %v1139 = vpow.pop %v1138
  %v1140 = vmul.f32 %v1120, 1.442695
  %v1141 = vpow.pop %v1140
  %v1142 = vmul.f32 %v1121, 1.442695
  %v1143 = vpow.pop %v1142
  %v1144 = vmul.f32 %v1122, 1.442695
  %v1145 = vpow.pop %v1144
  %v1146 = vmul.f32 %v1123, 1.442695
  %v1147 = vpow.pop %v1146
  %v1148 = vmul.f32 %v1124, 1.442695
  %v1149 = vpow.pop %v1148
  %v1150 = vmul.f32 %v1125, 1.442695
  %v1151 = vpow.pop %v1150
  %v1152 = vmul.f32 %v1126, 1.442695
  %v1153 = vpow.pop %v1152
  %v1154 = vmul.f32 %v1127, 1.442695
  %v1155 = vpow.pop %v1154
  %v1156 = vmul.f32 %v1128, 1.442695
  %v1157 = vpow.pop %v1156
  %v1158 = vmul.f32 %v1129, 1.442695
  %v1159 = vpow.pop %v1158
  %v1160 = vmul.f32 %v1130, 1.442695
  %v1161 = vpow.pop %v1160
  %v1162 = vmul.f32 %v1131, 1.442695
  %v1163 = vpow.pop %v1162
  %v1164 = vmul.f32 %v1132, 1.442695
  %v1165 = vpow.pop %v1164
  %v1166 = vmul.f32 %v1133, 1.442695
  %v1167 = vpow.pop %v1166
  %v1168 = vmul.f32 %v1134, 1.442695
  %v1169 = vpow.pop %v1168
  %v1170 = vmul.f32 %v1135, 1.442695
  %v1171 = vpow.pop %v1170
  %v1172 = vsub.f32 %v1137, 1.0
  %v1173 = vsub.f32 %v1139, 1.0
  %v1174 = vsub.f32 %v1141, 1.0
  %v1175 = vsub.f32 %v1143, 1.0
  %v1176 = vsub.f32 %v1145, 1.0
  %v1177 = vsub.f32 %v1147, 1.0
  %v1178 = vsub.f32 %v1149, 1.0
  %v1179 = vsub.f32 %v1151, 1.0
  %v1180 = vsub.f32 %v1153, 1.0
  %v1181 = vsub.f32 %v1155, 1.0
  %v1182 = vsub.f32 %v1157, 1.0
  %v1183 = vsub.f32 %v1159, 1.0
  %v1184 = vsub.f32 %v1161, 1.0
  %v1185 = vsub.f32 %v1163, 1.0
  %v1186 = vsub.f32 %v1165, 1.0
  %v1187 = vsub.f32 %v1167, 1.0
  %v1188 = vsub.f32 %v1169, 1.0
  %v1189 = vsub.f32 %v1171, 1.0
  %v1190 = vsel %vm1100, %v1082, %v1172
  %v1191 = vsel %vm1101, %v1083, %v1173
  %v1192 = vsel %vm1102, %v1084, %v1174
  %v1193 = vsel %vm1103, %v1085, %v1175
  %v1194 = vsel %vm1104, %v1086, %v1176
  %v1195 = vsel %vm1105, %v1087, %v1177
  %v1196 = vsel %vm1106, %v1088, %v1178
  %v1197 = vsel %vm1107, %v1089, %v1179
  %v1198 = vsel %vm1108, %v1090, %v1180
  %v1199 = vsel %vm1109, %v1091, %v1181
  %v1200 = vsel %vm1110, %v1092, %v1182
  %v1201 = vsel %vm1111, %v1093, %v1183
  %v1202 = vsel %vm1112, %v1094, %v1184
  %v1203 = vsel %vm1113, %v1095, %v1185
  %v1204 = vsel %vm1114, %v1096, %v1186
  %v1205 = vsel %vm1115, %v1097, %v1187
  %v1206 = vsel %vm1116, %v1098, %v1188
  %v1207 = vsel %vm1117, %v1099, %v1189
  %v1208 = vld [vmem:[%s2 + $0x1b] sm:$0x1]
  %v1209 = vld [vmem:[%s2 + $0x20] sm:$0x1]
  %1211 = vset.pattern.permute.xlu0 0
  %1212 = vperm.xlu0 %1211, %v1209
  %v1213 = vpop.permute.xlu0 %1212
  %v1216 = vsel %vm545, %v1208, 0
  %v1219 = vsel %vm545, %v1190, 0
  %v1222 = vsel %vm545, %v1191, 0
  %v1225 = vsel %vm545, %v1192, 0
  %v1228 = vsel %vm545, %v1193, 0
  %v1231 = vsel %vm545, %v1194, 0
  %v1234 = vsel %vm545, %v1195, 0
  %v1237 = vsel %vm545, %v1196, 0
  %v1240 = vsel %vm545, %v1197, 0
  %v1243 = vsel %vm545, %v1198, 0
  %v1246 = vsel %vm545, %v1199, 0
  %v1249 = vsel %vm545, %v1200, 0
  %v1252 = vsel %vm545, %v1201, 0
  %v1255 = vsel %vm545, %v1202, 0
  %v1258 = vsel %vm545, %v1203, 0
  %v1261 = vsel %vm545, %v1204, 0
  %v1264 = vsel %vm545, %v1205, 0
  %1266 = vmatpush.xpose.msra.mxu0 %v1264
  %1267 = vmatpush.xpose.msra.mxu0 %v1261
  %1268 = vmatpush.xpose.msra.mxu0 %v1258
  %1269 = vmatpush.xpose.msra.mxu0 %v1255
  %1270 = vmatpush.xpose.msra.mxu0 %v1252
  %1271 = vmatpush.xpose.msra.mxu0 %v1249
  %1272 = vmatpush.xpose.msra.mxu0 %v1246
  %1273 = vmatpush.xpose.msra.mxu0 %v1243
  %1274 = vmatpush.xpose.msra.mxu0 %v1240
  %1275 = vmatpush.xpose.msra.mxu0 %v1237
  %1276 = vmatpush.xpose.msra.mxu0 %v1234
  %1277 = vmatpush.xpose.msra.mxu0 %v1231
  %1278 = vmatpush.xpose.msra.mxu0 %v1228
  %1279 = vmatpush.xpose.msra.mxu0 %v1225
  %1280 = vmatpush.xpose.msra.mxu0 %v1222
  %1281 = vmatpush.xpose.msra.mxu0 %v1219
  %1282 = vmatmul.f32.gmra.mxu0 %v1216
  %v1283 = vpop.f32.mrf.mxu0
  %v1284 = vadd.f32 %v1213, %v1283
  %1285 = vdwg.mxu0
  %v1286 = vld [vmem:[%s2 + $0x1f] sm:$0x1]
  %1287 = vset.pattern.permute.xlu0 1
  %1288 = vperm.xlu0 %1287, %v1209
  %v1289 = vpop.permute.xlu0 %1288
  %v1292 = vsel %vm545, %v1286, 0
  %v1295 = vsel %vm545, %v1206, 0
  %v1298 = vsel %vm545, %v1207, 0
  %v1301 = vsel %vm545, 0.0, 0
  %1303 = vmatpush.xpose.msra.mxu0 %v1301
  %1304 = vmatpush.xpose.msra.mxu0 %v1301
  %1305 = vmatpush.xpose.msra.mxu0 %v1301
  %1306 = vmatpush.xpose.msra.mxu0 %v1301
  %1307 = vmatpush.xpose.msra.mxu0 %v1301
  %1308 = vmatpush.xpose.msra.mxu0 %v1301
  %1309 = vmatpush.xpose.msra.mxu0 %v1301
  %1310 = vmatpush.xpose.msra.mxu0 %v1301
  %1311 = vmatpush.xpose.msra.mxu0 %v1301
  %1312 = vmatpush.xpose.msra.mxu0 %v1301
  %1313 = vmatpush.xpose.msra.mxu0 %v1301
  %1314 = vmatpush.xpose.msra.mxu0 %v1301
  %1315 = vmatpush.xpose.msra.mxu0 %v1301
  %1316 = vmatpush.xpose.msra.mxu0 %v1301
  %1317 = vmatpush.xpose.msra.mxu0 %v1298
  %1318 = vmatpush.xpose.msra.mxu0 %v1295
  %1319 = vmatmul.f32.gmra.mxu0 %v1292
  %v1320 = vpop.f32.mrf.mxu0
  %v1321 = vadd.f32 %v1289, %v1320
  %1322 = vdwg.mxu0
  %1323 = vst [vmem:[%s4] sm:$0x1] %v1284
  %1324 = vst [vmem:[%s4 + $0x1] sm:$0x1] %v1321
  // Predicated region
  $region18: #{neural_net_forward.1} parent=0 // pred_check
    _
  $region19: #{neural_net_forward.1} parent=0 // pred_check_branch
    %1326 = sbr.rel (0) target = $region21
  $region20: #{neural_net_forward.1} parent=0 // pred_region
    _
  $region21: #{neural_net_forward.1} parent=0 // pred_fallthru
    _
  // Predicated region
  $region22: #{neural_net_forward.1} parent=0 // pred_check
    _
  $region23: #{neural_net_forward.1} parent=0 // pred_check_branch
    %1328 = sbr.rel (0) target = $region25
  $region24: #{neural_net_forward.1} parent=0 // pred_region
    _
  $region25: #{neural_net_forward.1} parent=0 // pred_fallthru
    _

</llo_original>
